<compile_context>
chip_gen: v7x
topology: tpu7x:2x2x1
jax: 0.10.0
libtpu: 0.0.40
codegen_flags: <defaults>
</compile_context>

<pallas_src>
import functools

import jax
import jax.numpy as jnp
from jax import lax
from jax.experimental import pallas as pl
from jax.experimental.pallas import tpu as pltpu


# ----------------------------------------------------------------------------
# Pallas kernel: shared MLP stack (1x1 convs + folded BN + ReLU), optional max-pool
# over `pool` consecutive rows (the nsample axis).
#
# feat_mode:
#   None      -> no feature input (xyz only; layer 0 is 3 VPU FMAs)
#   "matmul"  -> layer 0 multiplies the feature slab by W0 on the MXU
#   "preact"  -> layer-0 feature matmul was hoisted BEFORE grouping (1x1 conv commutes
#                with the gather); the kernel only adds it to the xyz part + bias + ReLU.
# ----------------------------------------------------------------------------
def _mlp_kernel(n_layers, pool, has_xyz, feat_mode, *refs):
    idx = 0
    xyz_ref = feat_ref = w0_xyz_ref = None
    if has_xyz:
        xyz_ref = refs[idx]; idx += 1
    if feat_mode is not None:
        feat_ref = refs[idx]; idx += 1
    if has_xyz:
        w0_xyz_ref = refs[idx]; idx += 1
    n_mm = n_layers - 1 + (1 if feat_mode == "matmul" else 0)
    w_refs = refs[idx: idx + n_mm]; idx += n_mm
    b_refs = refs[idx: idx + n_layers]; idx += n_layers
    o_ref = refs[idx]

    # ---- layer 0 ----
    acc = None
    wi = 0
    if feat_mode == "matmul":
        acc = jnp.dot(feat_ref[...], w_refs[0][...],
                      preferred_element_type=jnp.float32)        # bf16 x bf16 -> f32
        wi = 1
    elif feat_mode == "preact":
        acc = feat_ref[...].astype(jnp.float32)                  # hoisted layer-0 matmul
    if has_xyz:
        # 3-wide xyz contribution as VPU outer-product FMAs (no MXU K waste).  With the
        # sa2 "preact" hoist there is no layer-0 matmul left to overlap; in "matmul" mode
        # these co-issue with the MXU pushes (different VLIW slots).
        xyz = xyz_ref[...].astype(jnp.float32)                   # (R, 8); cols 0:3 valid
        wx = w0_xyz_ref[...]                                     # (3, C1) f32
        xa = (xyz[:, 0:1] * wx[0:1, :]
              + xyz[:, 1:2] * wx[1:2, :]
              + xyz[:, 2:3] * wx[2:3, :])
        acc = xa if acc is None else acc + xa
    # f32 bias+ReLU epilogue (v5e has no bf16 VALU), then pack to bf16 once.
    h = jnp.maximum(acc + b_refs[0][...], 0.0).astype(jnp.bfloat16)

    # ---- layers 1..n-1: MXU matmuls, bf16 activations, f32 accumulation ----
    for l in range(1, n_layers):
        hm = jnp.dot(h, w_refs[wi][...], preferred_element_type=jnp.float32)
        h = jnp.maximum(hm + b_refs[l][...], 0.0).astype(jnp.bfloat16)
        wi += 1

    if pool is not None:
        npnt = h.shape[0] // pool
        h = h.reshape(npnt, pool, h.shape[1]).max(axis=1)        # bf16 max (order-exact)
    o_ref[...] = h.astype(o_ref.dtype)


# ----------------------------------------------------------------------------
# Tiling / VMEM budgeting helpers.
# ----------------------------------------------------------------------------
def _vmem_capacity_bytes():
    try:
        info = pltpu.get_tpu_info()
        cap = getattr(info, "vmem_capacity_bytes", None)
        if cap:
            return int(cap)
    except Exception:
        pass
    return 64 * 1024 * 1024          # conservative fallback (v7x per-TC size)


def _vmem_block_bytes(shape, dtype):
    itemsize = jnp.dtype(dtype).itemsize
    lanes = max(((int(shape[-1]) + 127) // 128) * 128, 128)
    rows = 1
    for d in shape[:-1]:
        rows *= max(int(d), 1)
    sub_mult = 8 * max(1, 4 // itemsize)          # f32 -> 8 sublanes, bf16 -> 16
    rows = ((rows + sub_mult - 1) // sub_mult) * sub_mult
    return rows * lanes * itemsize


def _pick_row_tile(R, pool, target_rows):
    """Pad R to a multiple of pool*8 (so tiling is always legal) and pick the largest
    row tile <= target_rows that divides the padded R and keeps whole pool groups."""
    unit = (pool if pool is not None else 1) * 8
    R_pad = ((R + unit - 1) // unit) * unit
    m = R_pad // unit
    best = 1
    for d in range(1, m + 1):
        if m % d == 0 and d * unit <= target_rows:
            best = d
    return R_pad, best * unit


def shared_mlp(xyz, feat, stack, *, feat_mode, pool=None, out_dtype=jnp.bfloat16):
    """xyz: (B,R,3) f32 or None; feat: (B,R,Cf) or None (channels-last).
    stack: prepared parameter dict from prepare_stack() (bf16 MXU weights, f32 xyz/bias).
    Returns (B, R//pool, C_out) if pool else (B, R, C_out)."""
    has_xyz = xyz is not None
    assert has_xyz or feat is not None
    if feat is None:
        feat_mode = None
    ref_arr = xyz if has_xyz else feat
    B, R = ref_arr.shape[0], ref_arr.shape[1]
    biases = stack["biases"]
    w_mm = stack["w_mm"]
    n_layers = len(biases)
    C_out = biases[-1].shape[-1]
    if pool is not None:
        assert R % pool == 0

    phys = _vmem_capacity_bytes()
    target_rows = 8192 if phys >= (100 << 20) else 4096     # v5e/v6e (128 MiB) vs v7x (64 MiB)
    unit = (pool if pool is not None else 1) * 8
    R_pad, r_tile = _pick_row_tile(R, pool, target_rows)

    def est_vmem(rt):
        rot = rt // pool if pool is not None else rt
        sb = 0
        if has_xyz:
            sb += _vmem_block_bytes((rt, 8), jnp.float32)
        if feat is not None:
            sb += _vmem_block_bytes((rt, feat.shape[-1]), jnp.bfloat16)
        ob = _vmem_block_bytes((rot, C_out), out_dtype)
        wb = 0
        if has_xyz:
            wb += _vmem_block_bytes(stack["w_xyz"].shape, jnp.float32)
        for w in w_mm:
            wb += _vmem_block_bytes(w.shape, jnp.bfloat16)
        for b in biases:
            wb += _vmem_block_bytes(b.shape, jnp.float32)
        widest = max(b.shape[-1] for b in biases)
        interm = 4 * _vmem_block_bytes((rt, widest), jnp.float32)   # f32 temporaries headroom
        return 2 * sb + 2 * ob + 2 * wb + interm + (8 << 20)

    cap = phys - (8 << 20)
    while est_vmem(r_tile) > cap and (r_tile // unit) % 2 == 0:
        r_tile //= 2                               # keep double buffering within VMEM (v7x)
    n_blocks = R_pad // r_tile
    if (B * n_blocks) % 2 == 1 and (r_tile // unit) % 2 == 0:
        r_tile //= 2                               # even block count -> both v7x TCs busy
        n_blocks = R_pad // r_tile
    vmem_limit = int(min(max(est_vmem(r_tile), 32 << 20), phys))

    r_out_tile = r_tile // pool if pool is not None else r_tile
    R_out_pad = R_pad // pool if pool is not None else R_pad
    R_out = R // pool if pool is not None else R

    def pad_rows(x):
        return x if x.shape[1] == R_pad else jnp.pad(
            x, ((0, 0), (0, R_pad - x.shape[1]), (0, 0)))

    args, in_specs = [], []
    if has_xyz:
        x = xyz.astype(jnp.float32)
        if x.shape[-1] < 8:                        # lane-pad 3 -> 8: contiguous DMA rows
            x = jnp.pad(x, ((0, 0), (0, 0), (0, 8 - x.shape[-1])))
        args.append(pad_rows(x))
        in_specs.append(pl.BlockSpec((None, r_tile, 8), lambda b, r: (b, r, 0)))
    if feat is not None:
        f = pad_rows(feat.astype(jnp.bfloat16))    # no-op when the producer already emitted bf16
        Cf = f.shape[-1]
        args.append(f)
        in_specs.append(pl.BlockSpec((None, r_tile, Cf), lambda b, r: (b, r, 0)))
    if has_xyz:
        wx = stack["w_xyz"]
        args.append(wx)
        in_specs.append(pl.BlockSpec(wx.shape, lambda b, r: (0, 0)))
    for w in w_mm:
        args.append(w)
        in_specs.append(pl.BlockSpec(w.shape, lambda b, r: (0, 0)))
    for bias in biases:
        args.append(bias)
        in_specs.append(pl.BlockSpec(bias.shape, lambda b, r: (0, 0)))

    out = pl.pallas_call(
        functools.partial(_mlp_kernel, n_layers, pool, has_xyz, feat_mode),
        out_shape=jax.ShapeDtypeStruct((B, R_out_pad, C_out), out_dtype),
        grid=(B, n_blocks),
        in_specs=in_specs,
        out_specs=pl.BlockSpec((None, r_out_tile, C_out), lambda b, r: (b, r, 0)),
        compiler_params=pltpu.CompilerParams(
            dimension_semantics=("parallel", "parallel"),
            vmem_limit_bytes=vmem_limit),
    )(*args)
    return out if R_out == R_out_pad else out[:, :R_out, :]


# ----------------------------------------------------------------------------
# Plain-JAX glue: FPS, ball query, grouping, three-NN interpolation.
# TODO(synk): at real scale (npoint=4096, nsample=64) FPS/ball-query dominate wall clock;
#             they need a scalar-prefetch Pallas formulation of their own.
# ----------------------------------------------------------------------------
def farthest_point_sample(xyz, npoint):
    B, N, _ = xyz.shape

    def body(i, state):
        inds, dists, farthest = state
        inds = inds.at[:, i].set(farthest)
        centroid = jnp.take_along_axis(xyz, farthest[:, None, None], axis=1)  # (B,1,3)
        d = jnp.sum((xyz - centroid) ** 2, axis=-1)                           # (B,N)
        dists = jnp.minimum(dists, d)
        farthest = jnp.argmax(dists, axis=-1).astype(jnp.int32)
        return inds, dists, farthest

    inds = jnp.zeros((B, npoint), jnp.int32)
    dists = jnp.full((B, N), 1e10, jnp.float32)
    farthest = jnp.zeros((B,), jnp.int32)
    inds, _, _ = lax.fori_loop(0, npoint, body, (inds, dists, farthest))
    return inds


def ball_query(radius, nsample, xyz, new_xyz):
    """First `nsample` in-radius points in ascending index order, padded with the first
    found (index 0 when no point is in radius — matches the CUDA zero-init behaviour).
    Single masked top-k instead of a Python argmax loop."""
    N = xyz.shape[1]
    d2 = jnp.sum((new_xyz[:, :, None, :] - xyz[:, None, :, :]) ** 2, axis=-1)  # (B,S,N)
    within = d2 < radius * radius
    arange = jnp.arange(N, dtype=jnp.int32)
    keys = jnp.where(within, arange, arange + N)        # in-radius points sort first
    neg_top, _ = lax.top_k(-keys, nsample)              # nsample smallest keys, ascending
    sel = (-neg_top).astype(jnp.int32)
    first_idx = jnp.argmax(within, axis=-1).astype(jnp.int32)   # 0 if none within
    return jnp.where(sel < N, sel, first_idx[..., None])        # (B,S,nsample) int32


def group_points(points, idx):
    # points (B,N,C), idx (B,S,ns) -> (B,S,ns,C)
    B, S, ns = idx.shape
    C = points.shape[-1]
    flat = jnp.take_along_axis(points, idx.reshape(B, S * ns)[:, :, None], axis=1)
    return flat.reshape(B, S, ns, C)


def sa_module(xyz, feats_nlc, npoint, radius, nsample, stack, *,
              feat_mode, normalize_xyz=True):
    """feats_nlc is either raw features (feat_mode='matmul') or layer-0 pre-activations
    computed BEFORE grouping (feat_mode='preact'); the 1x1 conv commutes with the gather."""
    if feats_nlc is None:
        feat_mode = None
    inds = farthest_point_sample(xyz, npoint)
    new_xyz = jnp.take_along_axis(xyz, inds[:, :, None], axis=1)     # (B,npoint,3)
    idx = ball_query(radius, nsample, xyz, new_xyz)
    grouped_xyz = group_points(xyz, idx) - new_xyz[:, :, None, :]    # (B,S,ns,3)
    if normalize_xyz:
        grouped_xyz = grouped_xyz / radius
    B, S, ns, _ = grouped_xyz.shape
    gxyz = grouped_xyz.reshape(B, S * ns, 3)
    gfeat = None
    if feats_nlc is not None:
        gfeat = group_points(feats_nlc, idx).reshape(B, S * ns, -1)
    new_feats = shared_mlp(gxyz, gfeat, stack, feat_mode=feat_mode, pool=ns,
                           out_dtype=jnp.bfloat16)                   # (B,S,Cout) bf16
    return new_xyz, new_feats, inds


def three_nn_interpolate(unknown, known, known_feats_nlc):
    d2 = jnp.sum((unknown[:, :, None, :] - known[:, None, :, :]) ** 2, axis=-1)  # (B,n,m)
    neg_d2, idx = lax.top_k(-d2, 3)
    dist = jnp.sqrt(jnp.maximum(-neg_d2, 0.0))
    dist_recip = 1.0 / (dist + 1e-8)
    weight = dist_recip / jnp.sum(dist_recip, axis=-1, keepdims=True)            # (B,n,3)
    B, n, _ = idx.shape
    C = known_feats_nlc.shape[-1]
    gathered = jnp.take_along_axis(
        known_feats_nlc, idx.reshape(B, n * 3)[:, :, None], axis=1).reshape(B, n, 3, C)
    return jnp.sum(gathered * weight[..., None], axis=2)                          # (B,n,C) f32


def fp_module(unknown, known, unknown_feats_nlc, known_feats_nlc, stack,
              out_dtype=jnp.bfloat16):
    interp = three_nn_interpolate(unknown, known, known_feats_nlc).astype(jnp.bfloat16)
    if unknown_feats_nlc is not None:
        feats = jnp.concatenate([interp, unknown_feats_nlc.astype(jnp.bfloat16)], axis=-1)
    else:
        feats = interp
    return shared_mlp(None, feats, stack, feat_mode="matmul", pool=None,
                      out_dtype=out_dtype)


# ----------------------------------------------------------------------------
# Parameters (deterministic, synthetic).  BN scale folded into the weight columns at
# build time (inference identity stats); weights pre-cast to bf16 once here so no
# per-forward convert pass is needed.
# ----------------------------------------------------------------------------
def make_mlp_weights(key, dims):
    bn_scale = 1.0 / jnp.sqrt(1.0 + 1e-5)
    layers = []
    for i in range(len(dims) - 1):
        key, sub = jax.random.split(key)
        w = jax.random.normal(sub, (dims[i], dims[i + 1]), jnp.float32) / jnp.sqrt(dims[i])
        layers.append((w * bn_scale, jnp.zeros((1, dims[i + 1]), jnp.float32)))
    return key, layers


def prepare_stack(layers, *, xyz_rows=0, hoist_layer0_feat=False):
    ws = [w for w, _ in layers]
    bs = [b for _, b in layers]
    stack = {"biases": [b.astype(jnp.float32) for b in bs]}
    w0 = ws[0]
    if xyz_rows:
        stack["w_xyz"] = w0[:xyz_rows].astype(jnp.float32)   # VPU FMA rows stay f32
        w0_feat = w0[xyz_rows:]
    else:
        w0_feat = w0
    mm = []
    if hoist_layer0_feat:
        stack["w0_feat"] = w0_feat.astype(jnp.bfloat16)      # consumed before grouping
    elif w0_feat.shape[0] > 0:
        mm.append(w0_feat.astype(jnp.bfloat16))
    mm += [w.astype(jnp.bfloat16) for w in ws[1:]]
    stack["w_mm"] = mm
    return stack


def build_params(key, input_feature_dim=0):
    key, sa1 = make_mlp_weights(key, [input_feature_dim + 3, 64, 64, 128])   # use_xyz: +3
    key, sa2 = make_mlp_weights(key, [256 + 3, 256, 256, 256])
    key, fp3 = make_mlp_weights(key, [128 + 256, 256, 256])
    key, fp4 = make_mlp_weights(key, [256, 256, 256])
    return {
        "sa1": prepare_stack(sa1, xyz_rows=3),
        "sa2": prepare_stack(sa2, xyz_rows=3, hoist_layer0_feat=True),
        "fp3": prepare_stack(fp3),
        "fp4": prepare_stack(fp4),
    }


# ----------------------------------------------------------------------------
# PointConvModule.forward
# ----------------------------------------------------------------------------
def point_conv_module_forward(inputs, params, npoint1=16, npoint2=16, nsample=8):
    end_points = {}
    pcd = inputs["pcd_xyz"]                     # (B, N, 3 + input_feature_dim)
    xyz = pcd[..., 0:3]
    features_nlc = pcd[..., 3:].astype(jnp.bfloat16) if pcd.shape[-1] > 3 else None

    # sa1: radius 0.1, mlp [3,64,64,128]
    sa1_xyz, sa1_feats, sa1_inds = sa_module(
        xyz, features_nlc, npoint1, 0.1, nsample, params["sa1"], feat_mode="matmul")
    end_points["sa1_inds"] = sa1_inds
    end_points["sa1_xyz"] = sa1_xyz
    end_points["sa1_features"] = jnp.transpose(sa1_feats, (0, 2, 1)).astype(jnp.float32)

    # RGB fusion with the sa2 layer-0 hoist:  the PyTorch module zero-pads pcd/rgb
    # features to 256 channels and concatenates; half of that 256-wide layer-0 matmul is
    # structurally zero.  Since the 1x1 conv commutes with grouping, apply W0's two
    # 128-row halves to the UNGROUPED features here and gather 256-wide pre-activations.
    rgb_xyz = inputs["rgb_xyz"]                                   # (B, M, 3)
    rgb_feats_nlc = jnp.transpose(inputs["rgb_features"], (0, 2, 1)).astype(jnp.bfloat16)
    w0_feat = params["sa2"]["w0_feat"]                            # (256, 256) bf16
    c_half = rgb_feats_nlc.shape[-1]                              # 128
    pre_pcd = jnp.einsum("bnc,cd->bnd", sa1_feats, w0_feat[:c_half],
                         preferred_element_type=jnp.float32).astype(jnp.bfloat16)
    pre_rgb = jnp.einsum("bnc,cd->bnd", rgb_feats_nlc, w0_feat[c_half:],
                         preferred_element_type=jnp.float32).astype(jnp.bfloat16)
    xyz2 = jnp.concatenate([sa1_xyz, rgb_xyz], axis=1)
    pre2 = jnp.concatenate([pre_pcd, pre_rgb], axis=1)            # (B, npoint1+M, 256)

    # sa2: radius 0.2, mlp [259,256,256,256]  (layer-0 features hoisted, xyz on VPU)
    sa2_xyz, sa2_feats, sa2_inds = sa_module(
        xyz2, pre2, npoint2, 0.2, nsample, params["sa2"], feat_mode="preact")
    end_points["sa2_inds"] = sa2_inds
    end_points["sa2_xyz"] = sa2_xyz
    end_points["sa2_features"] = jnp.transpose(sa2_feats, (0, 2, 1)).astype(jnp.float32)

    # fp3: interpolate sa2 -> sa1, skip = sa1 features, mlp [384,256,256]  (bf16 out)
    fp3_feats = fp_module(sa1_xyz, sa2_xyz, sa1_feats, sa2_feats, params["fp3"])
    # fp4: interpolate sa1 -> full cloud, no skip, mlp [256,256,256]        (f32 out)
    fp4_feats = fp_module(pcd[..., 0:3], sa1_xyz, None, fp3_feats, params["fp4"],
                          out_dtype=jnp.float32)

    end_points["out_features"] = jnp.transpose(fp4_feats, (0, 2, 1))   # (B,256,N)
    end_points["out_xyz"] = pcd
    return end_points


if __name__ == "__main__":
    key = jax.random.PRNGKey(0)
    k1, k2, k3 = jax.random.split(key, 3)

    # Small shapes: B=2, N=64 pcd points, M=32 rgb seeds; npoint scaled 4096->16, 2048->16,
    # nsample 64->8; channel widths kept as in the module (64/128/256).
    B, N, M = 2, 64, 32
    pcd_xyz = jax.random.uniform(k1, (B, N, 3), jnp.float32)
    rgb_xyz = jax.random.uniform(k2, (B, M, 3), jnp.float32)
    rgb_features = jax.random.normal(k3, (B, 128, M), jnp.float32)

    params = build_params(jax.random.PRNGKey(42), input_feature_dim=0)

    inputs = {"pcd_xyz": pcd_xyz, "rgb_xyz": rgb_xyz, "rgb_features": rgb_features}
    out = point_conv_module_forward(inputs, params)
    out = jax.tree_util.tree_map(jax.block_until_ready, out)

    assert out["out_features"].shape == (B, 256, N)
    assert out["sa1_features"].shape == (B, 128, 16)
    assert out["sa2_features"].shape == (B, 256, 16)
    assert out["out_features"].dtype == jnp.float32
    print("KERNEL_OK")
</pallas_src>

<mosaic_0001>
module attributes {stable_mosaic.version = 11 : i64} {
  func.func @_mlp_kernel(%arg0: i32, %arg1: i32, %arg2: memref<1x128x8xf32, #tpu.memory_space<vmem>>, %arg3: memref<3x64xf32, #tpu.memory_space<vmem>>, %arg4: memref<64x64xbf16, #tpu.memory_space<vmem>>, %arg5: memref<64x128xbf16, #tpu.memory_space<vmem>>, %arg6: memref<1x64xf32, #tpu.memory_space<vmem>>, %arg7: memref<1x64xf32, #tpu.memory_space<vmem>>, %arg8: memref<1x128xf32, #tpu.memory_space<vmem>>, %arg9: memref<1x16x128xbf16, #tpu.memory_space<vmem>>) attributes {dimension_semantics = [#tpu.dimension_semantics<parallel>, #tpu.dimension_semantics<parallel>], iteration_bounds = array<i64: 2, 1>, scalar_prefetch = 0 : i64, scratch_operands = 0 : i64, tpu.core_type = #tpu.core_type<tc>, window_params = [{transform_indices = @transform_0, window_bounds = array<i64: 1, 128, 8>}, {pipeline_mode = #tpu.pipeline_mode<synchronous>, transform_indices = @transform_1, window_bounds = array<i64: 3, 64>}, {pipeline_mode = #tpu.pipeline_mode<synchronous>, transform_indices = @transform_2, window_bounds = array<i64: 64, 64>}, {pipeline_mode = #tpu.pipeline_mode<synchronous>, transform_indices = @transform_3, window_bounds = array<i64: 64, 128>}, {pipeline_mode = #tpu.pipeline_mode<synchronous>, transform_indices = @transform_4, window_bounds = array<i64: 1, 64>}, {pipeline_mode = #tpu.pipeline_mode<synchronous>, transform_indices = @transform_5, window_bounds = array<i64: 1, 64>}, {pipeline_mode = #tpu.pipeline_mode<synchronous>, transform_indices = @transform_6, window_bounds = array<i64: 1, 128>}, {transform_indices = @transform_7, window_bounds = array<i64: 1, 16, 128>}]} {
    %c0 = arith.constant 0 : index
    %c0_0 = arith.constant 0 : index
    %c0_1 = arith.constant 0 : index
    %0 = vector.load %arg2[%c0, %c0_0, %c0_1] : memref<1x128x8xf32, #tpu.memory_space<vmem>>, vector<1x128x8xf32>
    %1 = vector.shape_cast %0 : vector<1x128x8xf32> to vector<128x8xf32>
    %c0_2 = arith.constant 0 : index
    %c0_3 = arith.constant 0 : index
    %2 = vector.load %arg3[%c0_2, %c0_3] : memref<3x64xf32, #tpu.memory_space<vmem>>, vector<3x64xf32>
    %3 = vector.extract_strided_slice %1 {offsets = [0, 0], sizes = [128, 1], strides = [1, 1]} : vector<128x8xf32> to vector<128x1xf32>
    %4 = vector.extract_strided_slice %2 {offsets = [0, 0], sizes = [1, 64], strides = [1, 1]} : vector<3x64xf32> to vector<1x64xf32>
    %5 = vector.broadcast %3 : vector<128x1xf32> to vector<128x64xf32>
    %6 = vector.broadcast %4 : vector<1x64xf32> to vector<128x64xf32>
    %7 = arith.mulf %5, %6 : vector<128x64xf32>
    %8 = vector.extract_strided_slice %1 {offsets = [0, 1], sizes = [128, 1], strides = [1, 1]} : vector<128x8xf32> to vector<128x1xf32>
    %9 = vector.extract_strided_slice %2 {offsets = [1, 0], sizes = [1, 64], strides = [1, 1]} : vector<3x64xf32> to vector<1x64xf32>
    %10 = vector.broadcast %8 : vector<128x1xf32> to vector<128x64xf32>
    %11 = vector.broadcast %9 : vector<1x64xf32> to vector<128x64xf32>
    %12 = arith.mulf %10, %11 : vector<128x64xf32>
    %13 = arith.addf %7, %12 : vector<128x64xf32>
    %14 = vector.extract_strided_slice %1 {offsets = [0, 2], sizes = [128, 1], strides = [1, 1]} : vector<128x8xf32> to vector<128x1xf32>
    %15 = vector.extract_strided_slice %2 {offsets = [2, 0], sizes = [1, 64], strides = [1, 1]} : vector<3x64xf32> to vector<1x64xf32>
    %16 = vector.broadcast %14 : vector<128x1xf32> to vector<128x64xf32>
    %17 = vector.broadcast %15 : vector<1x64xf32> to vector<128x64xf32>
    %18 = arith.mulf %16, %17 : vector<128x64xf32>
    %19 = arith.addf %13, %18 : vector<128x64xf32>
    %c0_4 = arith.constant 0 : index
    %c0_5 = arith.constant 0 : index
    %20 = vector.load %arg6[%c0_4, %c0_5] : memref<1x64xf32, #tpu.memory_space<vmem>>, vector<1x64xf32>
    %21 = vector.broadcast %20 : vector<1x64xf32> to vector<128x64xf32>
    %22 = arith.addf %19, %21 : vector<128x64xf32>
    %cst = arith.constant 0.000000e+00 : f32
    %23 = vector.broadcast %cst : f32 to vector<128x64xf32>
    %24 = arith.maximumf %22, %23 : vector<128x64xf32>
    %25 = arith.truncf %24 : vector<128x64xf32> to vector<128x64xbf16>
    %c0_6 = arith.constant 0 : index
    %c0_7 = arith.constant 0 : index
    %26 = vector.load %arg4[%c0_6, %c0_7] : memref<64x64xbf16, #tpu.memory_space<vmem>>, vector<64x64xbf16>
    %cst_8 = arith.constant dense<0.000000e+00> : vector<128x64xf32>
    %27 = tpu.matmul %25, %26, %cst_8 {dimension_numbers = #tpu.dot_dimension_numbers<[1], [0], [0], [1], [0, 0, 1, 1], [], []>} : vector<128x64xbf16>, vector<64x64xbf16>, vector<128x64xf32> -> vector<128x64xf32>
    %c0_9 = arith.constant 0 : index
    %c0_10 = arith.constant 0 : index
    %28 = vector.load %arg7[%c0_9, %c0_10] : memref<1x64xf32, #tpu.memory_space<vmem>>, vector<1x64xf32>
    %29 = vector.broadcast %28 : vector<1x64xf32> to vector<128x64xf32>
    %30 = arith.addf %27, %29 : vector<128x64xf32>
    %cst_11 = arith.constant 0.000000e+00 : f32
    %31 = vector.broadcast %cst_11 : f32 to vector<128x64xf32>
    %32 = arith.maximumf %30, %31 : vector<128x64xf32>
    %33 = arith.truncf %32 : vector<128x64xf32> to vector<128x64xbf16>
    %c0_12 = arith.constant 0 : index
    %c0_13 = arith.constant 0 : index
    %34 = vector.load %arg5[%c0_12, %c0_13] : memref<64x128xbf16, #tpu.memory_space<vmem>>, vector<64x128xbf16>
    %cst_14 = arith.constant dense<0.000000e+00> : vector<128x128xf32>
    %35 = tpu.matmul %33, %34, %cst_14 {dimension_numbers = #tpu.dot_dimension_numbers<[1], [0], [0], [1], [0, 0, 1, 1], [], []>} : vector<128x64xbf16>, vector<64x128xbf16>, vector<128x128xf32> -> vector<128x128xf32>
    %c0_15 = arith.constant 0 : index
    %c0_16 = arith.constant 0 : index
    %36 = vector.load %arg8[%c0_15, %c0_16] : memref<1x128xf32, #tpu.memory_space<vmem>>, vector<1x128xf32>
    %37 = vector.broadcast %36 : vector<1x128xf32> to vector<128x128xf32>
    %38 = arith.addf %35, %37 : vector<128x128xf32>
    %cst_17 = arith.constant 0.000000e+00 : f32
    %39 = vector.broadcast %cst_17 : f32 to vector<128x128xf32>
    %40 = arith.maximumf %38, %39 : vector<128x128xf32>
    %41 = arith.truncf %40 : vector<128x128xf32> to vector<128x128xbf16>
    %42 = vector.shape_cast %41 : vector<128x128xbf16> to vector<16x8x128xbf16>
    %cst_18 = arith.constant dense<0xFF80> : vector<16x128xbf16>
    %43 = vector.multi_reduction <maximumf>, %42, %cst_18 [1] : vector<16x8x128xbf16> to vector<16x128xbf16>
    %c0_19 = arith.constant 0 : index
    %c0_20 = arith.constant 0 : index
    %c0_21 = arith.constant 0 : index
    %44 = vector.load %arg9[%c0_19, %c0_20, %c0_21] : memref<1x16x128xbf16, #tpu.memory_space<vmem>>, vector<1x16x128xbf16>
    %45 = vector.shape_cast %44 : vector<1x16x128xbf16> to vector<16x128xbf16>
    %46 = vector.shape_cast %43 : vector<16x128xbf16> to vector<1x16x128xbf16>
    tpu.vector_store %arg9[%c0_19, %c0_20, %c0_21], %46 {strides = array<i32>} : memref<1x16x128xbf16, #tpu.memory_space<vmem>>, vector<1x16x128xbf16>,
    return
  }
  func.func @transform_0(%arg0: i32, %arg1: i32) -> (i32, i32, i32) {
    %c0_i32 = arith.constant 0 : i32
    %c0_i32_0 = arith.constant 0 : i32
    return %arg0, %arg1, %c0_i32 : i32, i32, i32
  }
  func.func @transform_1(%arg0: i32, %arg1: i32) -> (i32, i32) {
    %c0_i32 = arith.constant 0 : i32
    %c0_i32_0 = arith.constant 0 : i32
    %c0_i32_1 = arith.constant 0 : i32
    return %c0_i32, %c0_i32_0 : i32, i32
  }
  func.func @transform_2(%arg0: i32, %arg1: i32) -> (i32, i32) {
    %c0_i32 = arith.constant 0 : i32
    %c0_i32_0 = arith.constant 0 : i32
    %c0_i32_1 = arith.constant 0 : i32
    return %c0_i32, %c0_i32_0 : i32, i32
  }
  func.func @transform_3(%arg0: i32, %arg1: i32) -> (i32, i32) {
    %c0_i32 = arith.constant 0 : i32
    %c0_i32_0 = arith.constant 0 : i32
    %c0_i32_1 = arith.constant 0 : i32
    return %c0_i32, %c0_i32_0 : i32, i32
  }
  func.func @transform_4(%arg0: i32, %arg1: i32) -> (i32, i32) {
    %c0_i32 = arith.constant 0 : i32
    %c0_i32_0 = arith.constant 0 : i32
    %c0_i32_1 = arith.constant 0 : i32
    return %c0_i32, %c0_i32_0 : i32, i32
  }
  func.func @transform_5(%arg0: i32, %arg1: i32) -> (i32, i32) {
    %c0_i32 = arith.constant 0 : i32
    %c0_i32_0 = arith.constant 0 : i32
    %c0_i32_1 = arith.constant 0 : i32
    return %c0_i32, %c0_i32_0 : i32, i32
  }
  func.func @transform_6(%arg0: i32, %arg1: i32) -> (i32, i32) {
    %c0_i32 = arith.constant 0 : i32
    %c0_i32_0 = arith.constant 0 : i32
    %c0_i32_1 = arith.constant 0 : i32
    return %c0_i32, %c0_i32_0 : i32, i32
  }
  func.func @transform_7(%arg0: i32, %arg1: i32) -> (i32, i32, i32) {
    %c0_i32 = arith.constant 0 : i32
    %c0_i32_0 = arith.constant 0 : i32
    return %arg0, %arg1, %c0_i32 : i32, i32, i32
  }
}

</mosaic_0001>

<llo_original>
// kernel: tpu_custom_call.1
$region0: #{tpu_custom_call.1}
  #allocation0 [shape = 'u32[]', space=smem, size = 0x4, offset = 0x4, fixed_abs, tag = 'smem constant byte address 0x4 - core index']
  #allocation1 [shape = 'u32[144,128]{1,0:T(1,128)}', space=vmem, size = 0x12000, scoped, tag = 'internal scratch']
  %s0 = inlined_call_operand.vmem [shape: f32[2,128,8], index: 0, kind: input, shape index: {}]
  %s1 = inlined_call_operand.vmem [shape: f32[3,64], index: 1, kind: input, shape index: {}]
  %s2 = inlined_call_operand.vmem [shape: bf16[64,64], index: 2, kind: input, shape index: {}]
  %s3 = inlined_call_operand.vmem [shape: bf16[64,128], index: 3, kind: input, shape index: {}]
  %s4 = inlined_call_operand.vmem [shape: f32[1,64], index: 4, kind: input, shape index: {}]
  %s5 = inlined_call_operand.vmem [shape: f32[1,64], index: 5, kind: input, shape index: {}]
  %s6 = inlined_call_operand.vmem [shape: f32[1,128], index: 6, kind: input, shape index: {}]
  %s7 = inlined_call_operand.hbm [shape: bf16[2,16,128], index: 7, kind: output, shape index: {}]
  %s8 = sld [smem:[#allocation0]]
  $region61: #{tpu_custom_call.1} parent=0
    _
  %s10 = ssub.s32 1, %s8
  %s11 = scalar_select 0, %s10, %s8
  $region1: #{tpu_custom_call.1} parent=0
    #allocation2 [shape = 'u8[8192]{0}', space=vmem, size = 0x2000, scoped, tag = 'output window, operand 0']
    #allocation3 [shape = 's32[2]{0}', space=sflag, size = 0x8, scoped, tag = 'scoped memory for tpu_custom_call.1']
    %12 = vsyncpa [#allocation3], 0
    %s13 = scalar_lea.sflag [#allocation3], 1
    %14 = vsyncpa %s13, 0
    loop: start=0, step=1, limit=4
    $region2: #{tpu_custom_call.1} parent=1 // loop_pre_header
      _
    $region3: #{tpu_custom_call.1} parent=1 // loop_header
      %s16 = sphi 0, %s20
      %p17 = scmp.ge.s32.totalorder %s16, 4
      %s23 = sphi 0, %s35
      %s24 = sphi 0, %s31
      %s25 = sphi 0, %s23
      %s26 = sphi 0, %s24
      %s27 = sphi 0, %s25
      %s28 = sphi 0, %s26
      %s40 = sphi 0, %s42
      %s43 = sphi 0, %s40
      %s44 = sphi 0, %s43
      %s60 = sphi 0, %s44
      %s64 = sphi 0, %s64
      %s66 = sphi 0, %s64
      %s67 = sphi 0, %s66
      %s81 = sphi 0, %s67
      %s85 = sphi 0, %s85
      %s87 = sphi 0, %s85
      %s88 = sphi 0, %s87
      %s102 = sphi 0, %s88
      %s106 = sphi 0, %s106
      %s108 = sphi 0, %s106
      %s109 = sphi 0, %s108
      %s123 = sphi 0, %s109
      %s127 = sphi 0, %s127
      %s129 = sphi 0, %s127
      %s130 = sphi 0, %s129
      %s144 = sphi 0, %s130
      %s148 = sphi 0, %s148
      %s150 = sphi 0, %s148
      %s151 = sphi 0, %s150
      %s165 = sphi 0, %s151
      %s169 = sphi 0, %s169
      %s171 = sphi 0, %s169
      %s172 = sphi 0, %s171
      %s186 = sphi 0, %s172
      %s194 = sphi 0, %s196
      %s197 = sphi 0, %s194
      %s198 = sphi 0, %s197
      %s214 = sphi 0, %s198
    $region4: #{tpu_custom_call.1} parent=1 // loop_header_branch
      %19 = sbr.rel (%p17) target = $region8
    $region5: #{tpu_custom_call.1} parent=1 // loop_body
      %s21 = ssub.s32 %s16, 1
      %s22 = ssub.s32 %s16, 2
      %s29 = sadd.s32 1, %s24
      %p30 = scmp.ge.s32.totalorder %s29, 1
      %s31 = scalar_select %p30, 0, %s29
      %s32 = sadd.s32 1, %s23
      %s33 = scalar_select %p30, %s32, %s23
      %p34 = scmp.ge.s32.totalorder %s33, 2
      %s35 = scalar_select %p34, 0, %s33
      %s36 = ssub.s32 %s23, %s35
      %s37 = ssub.s32 %s24, %s31
      %s38 = sor.u32 %s36, %s37
      %p39 = scmp.eq.s32.totalorder %s38, 0
      %s41 = sadd.s32 %s40, 1
      %s42 = scalar_select %p39, %s40, %s41
      %p45 = pneg %p39
      %p46 = scmp.eq.s32.totalorder %s16, 1
      %p47 = por %p45, %p46
      %p48 = scmp.ne.s32.totalorder %s40, %s43
      %p49 = scmp.eq.s32.totalorder %s16, 0
      %p50 = por %p48, %p49
      %p51 = scmp.ne.s32.totalorder %s40, %s43
      %p52 = scmp.eq.s32.totalorder %s21, 1
      %p53 = por %p51, %p52
      %p54 = scmp.ne.s32.totalorder %s43, %s44
      %p55 = scmp.eq.s32.totalorder %s21, 0
      %p56 = por %p54, %p55
      %p57 = scmp.ne.s32.totalorder %s43, %s44
      %p58 = scmp.eq.s32.totalorder %s22, 1
      %p59 = por %p57, %p58
      %p61 = scmp.ne.s32.totalorder %s44, %s60
      %p62 = scmp.eq.s32.totalorder %s22, 0
      %p63 = por %p61, %p62
      %s65 = sadd.s32 %s64, 1
      %p68 = scmp.eq.s32.totalorder %s16, 1
      %p69 = scmp.ne.s32.totalorder %s64, %s66
      %p70 = scmp.eq.s32.totalorder %s16, 0
      %p71 = por %p69, %p70
      %p72 = scmp.ne.s32.totalorder %s64, %s66
      %p73 = scmp.eq.s32.totalorder %s21, 1
      %p74 = por %p72, %p73
      %p75 = scmp.ne.s32.totalorder %s66, %s67
      %p76 = scmp.eq.s32.totalorder %s21, 0
      %p77 = por %p75, %p76
      %p78 = scmp.ne.s32.totalorder %s66, %s67
      %p79 = scmp.eq.s32.totalorder %s22, 1
      %p80 = por %p78, %p79
      %p82 = scmp.ne.s32.totalorder %s67, %s81
      %p83 = scmp.eq.s32.totalorder %s22, 0
      %p84 = por %p82, %p83
      %s86 = sadd.s32 %s85, 1
      %p89 = scmp.eq.s32.totalorder %s16, 1
      %p90 = scmp.ne.s32.totalorder %s85, %s87
      %p91 = scmp.eq.s32.totalorder %s16, 0
      %p92 = por %p90, %p91
      %p93 = scmp.ne.s32.totalorder %s85, %s87
      %p94 = scmp.eq.s32.totalorder %s21, 1
      %p95 = por %p93, %p94
      %p96 = scmp.ne.s32.totalorder %s87, %s88
      %p97 = scmp.eq.s32.totalorder %s21, 0
      %p98 = por %p96, %p97
      %p99 = scmp.ne.s32.totalorder %s87, %s88
      %p100 = scmp.eq.s32.totalorder %s22, 1
      %p101 = por %p99, %p100
      %p103 = scmp.ne.s32.totalorder %s88, %s102
      %p104 = scmp.eq.s32.totalorder %s22, 0
      %p105 = por %p103, %p104
      %s107 = sadd.s32 %s106, 1
      %p110 = scmp.eq.s32.totalorder %s16, 1
      %p111 = scmp.ne.s32.totalorder %s106, %s108
      %p112 = scmp.eq.s32.totalorder %s16, 0
      %p113 = por %p111, %p112
      %p114 = scmp.ne.s32.totalorder %s106, %s108
      %p115 = scmp.eq.s32.totalorder %s21, 1
      %p116 = por %p114, %p115
      %p117 = scmp.ne.s32.totalorder %s108, %s109
      %p118 = scmp.eq.s32.totalorder %s21, 0
      %p119 = por %p117, %p118
      %p120 = scmp.ne.s32.totalorder %s108, %s109
      %p121 = scmp.eq.s32.totalorder %s22, 1
      %p122 = por %p120, %p121
      %p124 = scmp.ne.s32.totalorder %s109, %s123
      %p125 = scmp.eq.s32.totalorder %s22, 0
      %p126 = por %p124, %p125
      %s128 = sadd.s32 %s127, 1
      %p131 = scmp.eq.s32.totalorder %s16, 1
      %p132 = scmp.ne.s32.totalorder %s127, %s129
      %p133 = scmp.eq.s32.totalorder %s16, 0
      %p134 = por %p132, %p133
      %p135 = scmp.ne.s32.totalorder %s127, %s129
      %p136 = scmp.eq.s32.totalorder %s21, 1
      %p137 = por %p135, %p136
      %p138 = scmp.ne.s32.totalorder %s129, %s130
      %p139 = scmp.eq.s32.totalorder %s21, 0
      %p140 = por %p138, %p139
      %p141 = scmp.ne.s32.totalorder %s129, %s130
      %p142 = scmp.eq.s32.totalorder %s22, 1
      %p143 = por %p141, %p142
      %p145 = scmp.ne.s32.totalorder %s130, %s144
      %p146 = scmp.eq.s32.totalorder %s22, 0
      %p147 = por %p145, %p146
      %s149 = sadd.s32 %s148, 1
      %p152 = scmp.eq.s32.totalorder %s16, 1
      %p153 = scmp.ne.s32.totalorder %s148, %s150
      %p154 = scmp.eq.s32.totalorder %s16, 0
      %p155 = por %p153, %p154
      %p156 = scmp.ne.s32.totalorder %s148, %s150
      %p157 = scmp.eq.s32.totalorder %s21, 1
      %p158 = por %p156, %p157
      %p159 = scmp.ne.s32.totalorder %s150, %s151
      %p160 = scmp.eq.s32.totalorder %s21, 0
      %p161 = por %p159, %p160
      %p162 = scmp.ne.s32.totalorder %s150, %s151
      %p163 = scmp.eq.s32.totalorder %s22, 1
      %p164 = por %p162, %p163
      %p166 = scmp.ne.s32.totalorder %s151, %s165
      %p167 = scmp.eq.s32.totalorder %s22, 0
      %p168 = por %p166, %p167
      %s170 = sadd.s32 %s169, 1
      %p173 = scmp.eq.s32.totalorder %s16, 1
      %p174 = scmp.ne.s32.totalorder %s169, %s171
      %p175 = scmp.eq.s32.totalorder %s16, 0
      %p176 = por %p174, %p175
      %p177 = scmp.ne.s32.totalorder %s169, %s171
      %p178 = scmp.eq.s32.totalorder %s21, 1
      %p179 = por %p177, %p178
      %p180 = scmp.ne.s32.totalorder %s171, %s172
      %p181 = scmp.eq.s32.totalorder %s21, 0
      %p182 = por %p180, %p181
      %p183 = scmp.ne.s32.totalorder %s171, %s172
      %p184 = scmp.eq.s32.totalorder %s22, 1
      %p185 = por %p183, %p184
      %p187 = scmp.ne.s32.totalorder %s172, %s186
      %p188 = scmp.eq.s32.totalorder %s22, 0
      %p189 = por %p187, %p188
      %s190 = ssub.s32 %s23, %s35
      %s191 = ssub.s32 %s24, %s31
      %s192 = sor.u32 %s190, %s191
      %p193 = scmp.eq.s32.totalorder %s192, 0
      %s195 = sadd.s32 %s194, 1
      %s196 = scalar_select %p193, %s194, %s195
      %p199 = pneg %p193
      %p200 = scmp.eq.s32.totalorder %s16, 1
      %p201 = por %p199, %p200
      %p202 = scmp.ne.s32.totalorder %s194, %s197
      %p203 = scmp.eq.s32.totalorder %s16, 0
      %p204 = por %p202, %p203
      %p205 = scmp.ne.s32.totalorder %s194, %s197
      %p206 = scmp.eq.s32.totalorder %s21, 1
      %p207 = por %p205, %p206
      %p208 = scmp.ne.s32.totalorder %s197, %s198
      %p209 = scmp.eq.s32.totalorder %s21, 0
      %p210 = por %p208, %p209
      %p211 = scmp.ne.s32.totalorder %s197, %s198
      %p212 = scmp.eq.s32.totalorder %s22, 1
      %p213 = por %p211, %p212
      %p215 = scmp.ne.s32.totalorder %s198, %s214
      %p216 = scmp.eq.s32.totalorder %s22, 0
      %p217 = por %p215, %p216
      %p218 = scmp.le.s32.totalorder 1, %s16
      %p219 = scmp.lt.s32.totalorder %s16, 3
      %p220 = pnand %p218, %p219
      %p221 = pneg %p220
      // Predicated region
      $region9: #{tpu_custom_call.1} parent=5 // pred_check
        _
      $region10: #{tpu_custom_call.1} parent=5 // pred_check_branch
        %223 = sbr.rel (%p220) target = $region12
      $region11: #{tpu_custom_call.1} parent=5 // pred_region
        %s224 = ssub.s32 %s16, 1
        // Predicated region
        $region13: #{tpu_custom_call.1} parent=11 // pred_check
          %p225 = pneg %p77
        $region14: #{tpu_custom_call.1} parent=11 // pred_check_branch
          %227 = sbr.rel (%p225) target = $region16
        $region15: #{tpu_custom_call.1} parent=11 // pred_region
          _
        $region16: #{tpu_custom_call.1} parent=11 // pred_fallthru
          _
        // Predicated region
        $region17: #{tpu_custom_call.1} parent=11 // pred_check
          %p228 = pneg %p98
        $region18: #{tpu_custom_call.1} parent=11 // pred_check_branch
          %230 = sbr.rel (%p228) target = $region20
        $region19: #{tpu_custom_call.1} parent=11 // pred_region
          _
        $region20: #{tpu_custom_call.1} parent=11 // pred_fallthru
          _
        // Predicated region
        $region21: #{tpu_custom_call.1} parent=11 // pred_check
          %p231 = pneg %p119
        $region22: #{tpu_custom_call.1} parent=11 // pred_check_branch
          %233 = sbr.rel (%p231) target = $region24
        $region23: #{tpu_custom_call.1} parent=11 // pred_region
          _
        $region24: #{tpu_custom_call.1} parent=11 // pred_fallthru
          _
        // Predicated region
        $region25: #{tpu_custom_call.1} parent=11 // pred_check
          %p234 = pneg %p140
        $region26: #{tpu_custom_call.1} parent=11 // pred_check_branch
          %236 = sbr.rel (%p234) target = $region28
        $region27: #{tpu_custom_call.1} parent=11 // pred_region
          _
        $region28: #{tpu_custom_call.1} parent=11 // pred_fallthru
          _
        // Predicated region
        $region29: #{tpu_custom_call.1} parent=11 // pred_check
          %p237 = pneg %p161
        $region30: #{tpu_custom_call.1} parent=11 // pred_check_branch
          %239 = sbr.rel (%p237) target = $region32
        $region31: #{tpu_custom_call.1} parent=11 // pred_region
          _
        $region32: #{tpu_custom_call.1} parent=11 // pred_fallthru
          _
        // Predicated region
        $region33: #{tpu_custom_call.1} parent=11 // pred_check
          %p240 = pneg %p182
        $region34: #{tpu_custom_call.1} parent=11 // pred_check_branch
          %242 = sbr.rel (%p240) target = $region36
        $region35: #{tpu_custom_call.1} parent=11 // pred_region
          _
        $region36: #{tpu_custom_call.1} parent=11 // pred_fallthru
          _
      $region12: #{tpu_custom_call.1} parent=5 // pred_fallthru
        _
      %p243 = scmp.lt.s32.totalorder %s16, 2
      // Predicated region
      $region37: #{tpu_custom_call.1} parent=5 // pred_check
        %p244 = pneg %p243
      $region38: #{tpu_custom_call.1} parent=5 // pred_check_branch
        %246 = sbr.rel (%p244) target = $region40
      $region39: #{tpu_custom_call.1} parent=5 // pred_region
        // Predicated region
        $region41: #{tpu_custom_call.1} parent=39 // pred_check
          %p247 = pneg %p50
        $region42: #{tpu_custom_call.1} parent=39 // pred_check_branch
          %249 = sbr.rel (%p247) target = $region44
        $region43: #{tpu_custom_call.1} parent=39 // pred_region
          %s250 = smul.u32 16, %s24
          %p251 = scmp.lt.s32.totalorder %s23, 1
          %s252 = scalar_select %p251, %s23, 1
          %p253 = scmp.lt.s32.totalorder %s250, 15
          %s254 = scalar_select %p253, %s250, 15
          %s255 = smul.addr %s252, 16
          %s256 = sadd.s32 %s254, %s255
          %s257 = smul.addr %s256, 8
          %s258 = scalar_lea.vmem %s0, %s257
          %s259 = smul.u32 16, %s24
        $region44: #{tpu_custom_call.1} parent=39 // pred_fallthru
          _
      $region40: #{tpu_custom_call.1} parent=5 // pred_fallthru
        _
      %p260 = scmp.le.s32.totalorder 1, %s16
      %p261 = scmp.lt.s32.totalorder %s16, 3
      %p262 = pnand %p260, %p261
      %p263 = pneg %p262
      // Predicated region
      $region45: #{tpu_custom_call.1} parent=5 // pred_check
        _
      $region46: #{tpu_custom_call.1} parent=5 // pred_check_branch
        %265 = sbr.rel (%p262) target = $region48
      $region47: #{tpu_custom_call.1} parent=5 // pred_region
        %s266 = ssub.s32 %s16, 1
        %s267 = smul.u32 16, %s26
        %p268 = scmp.lt.s32.totalorder %s25, 1
        %s269 = scalar_select %p268, %s25, 1
        %p270 = scmp.lt.s32.totalorder %s267, 15
        %s271 = scalar_select %p270, %s267, 15
        %s272 = smul.addr %s269, 16
        %s273 = sadd.s32 %s271, %s272
        %s274 = smul.addr %s273, 8
        %s275 = scalar_lea.vmem %s0, %s274
        %p276 = pneg %p56
        %p277 = pneg %p53
        %p278 = pneg %p77
        %p279 = pneg %p74
        %p280 = pneg %p98
        %p281 = pneg %p95
        %p282 = pneg %p119
        %p283 = pneg %p116
        %p284 = pneg %p140
        %p285 = pneg %p137
        %p286 = pneg %p161
        %p287 = pneg %p158
        %p288 = pneg %p182
        %p289 = pneg %p179
        %p290 = pneg %p210
        %p291 = pneg %p207
        %s292 = sand.u32 %s197, 1
        %s293 = scalar_lea.sflag [#allocation3], %s292
        %s294 = sand.u32 %s197, 1
        %s295 = smul.addr %s294, 8
        %s296 = scalar_lea.vmem [#allocation2], %s295
        %s297 = smul.u32 16, %s26
        %p298 = scmp.lt.s32.totalorder %s25, 1
        %s299 = scalar_select %p298, %s25, 1
        %p300 = scmp.lt.s32.totalorder %s297, 15
        %s301 = scalar_select %p300, %s297, 15
        %s302 = smul.addr %s299, 16
        %s303 = sadd.s32 %s301, %s302
        %s304 = smul.addr %s303, 8
        %s305 = scalar_lea.vmem %s0, %s304
        %s306 = smul.u32 16, %s26
        %s307 = smul.u32 2, %s26
        %v310 = vld [vmem:[%s305] sm:$0xff]
        %v311 = vld [vmem:[%s305 + $0x8] sm:$0xff]
        %v312 = vld [vmem:[%s305 + $0x10] sm:$0xff]
        %v313 = vld [vmem:[%s305 + $0x18] sm:$0xff]
        %v314 = vld [vmem:[%s305 + $0x20] sm:$0xff]
        %v315 = vld [vmem:[%s305 + $0x28] sm:$0xff]
        %v316 = vld [vmem:[%s305 + $0x30] sm:$0xff]
        %v317 = vld [vmem:[%s305 + $0x38] sm:$0xff]
        %v318 = vld [vmem:[%s305 + $0x40] sm:$0xff]
        %v319 = vld [vmem:[%s305 + $0x48] sm:$0xff]
        %v320 = vld [vmem:[%s305 + $0x50] sm:$0xff]
        %v321 = vld [vmem:[%s305 + $0x58] sm:$0xff]
        %v322 = vld [vmem:[%s305 + $0x60] sm:$0xff]
        %v323 = vld [vmem:[%s305 + $0x68] sm:$0xff]
        %v324 = vld [vmem:[%s305 + $0x70] sm:$0xff]
        %v325 = vld [vmem:[%s305 + $0x78] sm:$0xff]
        %v326 = vld [vmem:[%s1] sm:$0x7]
        %328 = vset.pattern.permute.xlu0 0
        %329 = vperm.xlu0 %328, %v310
        %v330 = vpop.permute.xlu0 %329
        %333 = vset.pattern.permute.xlu0 0
        %334 = vperm.xlu0 %333, %v311
        %v335 = vpop.permute.xlu0 %334
        %338 = vset.pattern.permute.xlu0 0
        %339 = vperm.xlu0 %338, %v312
        %v340 = vpop.permute.xlu0 %339
        %343 = vset.pattern.permute.xlu0 0
        %344 = vperm.xlu0 %343, %v313
        %v345 = vpop.permute.xlu0 %344
        %348 = vset.pattern.permute.xlu0 0
        %349 = vperm.xlu0 %348, %v314
        %v350 = vpop.permute.xlu0 %349
        %353 = vset.pattern.permute.xlu0 0
        %354 = vperm.xlu0 %353, %v315
        %v355 = vpop.permute.xlu0 %354
        %358 = vset.pattern.permute.xlu0 0
        %359 = vperm.xlu0 %358, %v316
        %v360 = vpop.permute.xlu0 %359
        %363 = vset.pattern.permute.xlu0 0
        %364 = vperm.xlu0 %363, %v317
        %v365 = vpop.permute.xlu0 %364
        %368 = vset.pattern.permute.xlu0 0
        %369 = vperm.xlu0 %368, %v318
        %v370 = vpop.permute.xlu0 %369
        %373 = vset.pattern.permute.xlu0 0
        %374 = vperm.xlu0 %373, %v319
        %v375 = vpop.permute.xlu0 %374
        %378 = vset.pattern.permute.xlu0 0
        %379 = vperm.xlu0 %378, %v320
        %v380 = vpop.permute.xlu0 %379
        %383 = vset.pattern.permute.xlu0 0
        %384 = vperm.xlu0 %383, %v321
        %v385 = vpop.permute.xlu0 %384
        %388 = vset.pattern.permute.xlu0 0
        %389 = vperm.xlu0 %388, %v322
        %v390 = vpop.permute.xlu0 %389
        %393 = vset.pattern.permute.xlu0 0
        %394 = vperm.xlu0 %393, %v323
        %v395 = vpop.permute.xlu0 %394
        %398 = vset.pattern.permute.xlu0 0
        %399 = vperm.xlu0 %398, %v324
        %v400 = vpop.permute.xlu0 %399
        %403 = vset.pattern.permute.xlu0 0
        %404 = vperm.xlu0 %403, %v325
        %v405 = vpop.permute.xlu0 %404
        %v407 = vlaneseq
        %v408 = vshrl.u32 %v407, 7
        %v409 = vsub.s32 0, %v408
        %v410 = vrot.slane %v326, %v409
        %v411 = vmul.f32 %v330, %v410
        %v412 = vmul.f32 %v335, %v410
        %v413 = vmul.f32 %v340, %v410
        %v414 = vmul.f32 %v345, %v410
        %v415 = vmul.f32 %v350, %v410
        %v416 = vmul.f32 %v355, %v410
        %v417 = vmul.f32 %v360, %v410
        %v418 = vmul.f32 %v365, %v410
        %v419 = vmul.f32 %v370, %v410
        %v420 = vmul.f32 %v375, %v410
        %v421 = vmul.f32 %v380, %v410
        %v422 = vmul.f32 %v385, %v410
        %v423 = vmul.f32 %v390, %v410
        %v424 = vmul.f32 %v395, %v410
        %v425 = vmul.f32 %v400, %v410
        %v426 = vmul.f32 %v405, %v410
        %427 = vset.pattern.permute.xlu0 1
        %428 = vperm.xlu0 %427, %v310
        %v429 = vpop.permute.xlu0 %428
        %431 = vset.pattern.permute.xlu0 1
        %432 = vperm.xlu0 %431, %v311
        %v433 = vpop.permute.xlu0 %432
        %435 = vset.pattern.permute.xlu0 1
        %436 = vperm.xlu0 %435, %v312
        %v437 = vpop.permute.xlu0 %436
        %439 = vset.pattern.permute.xlu0 1
        %440 = vperm.xlu0 %439, %v313
        %v441 = vpop.permute.xlu0 %440
        %443 = vset.pattern.permute.xlu0 1
        %444 = vperm.xlu0 %443, %v314
        %v445 = vpop.permute.xlu0 %444
        %447 = vset.pattern.permute.xlu0 1
        %448 = vperm.xlu0 %447, %v315
        %v449 = vpop.permute.xlu0 %448
        %451 = vset.pattern.permute.xlu0 1
        %452 = vperm.xlu0 %451, %v316
        %v453 = vpop.permute.xlu0 %452
        %455 = vset.pattern.permute.xlu0 1
        %456 = vperm.xlu0 %455, %v317
        %v457 = vpop.permute.xlu0 %456
        %459 = vset.pattern.permute.xlu0 1
        %460 = vperm.xlu0 %459, %v318
        %v461 = vpop.permute.xlu0 %460
        %463 = vset.pattern.permute.xlu0 1
        %464 = vperm.xlu0 %463, %v319
        %v465 = vpop.permute.xlu0 %464
        %467 = vset.pattern.permute.xlu0 1
        %468 = vperm.xlu0 %467, %v320
        %v469 = vpop.permute.xlu0 %468
        %471 = vset.pattern.permute.xlu0 1
        %472 = vperm.xlu0 %471, %v321
        %v473 = vpop.permute.xlu0 %472
        %475 = vset.pattern.permute.xlu0 1
        %476 = vperm.xlu0 %475, %v322
        %v477 = vpop.permute.xlu0 %476
        %479 = vset.pattern.permute.xlu0 1
        %480 = vperm.xlu0 %479, %v323
        %v481 = vpop.permute.xlu0 %480
        %483 = vset.pattern.permute.xlu0 1
        %484 = vperm.xlu0 %483, %v324
        %v485 = vpop.permute.xlu0 %484
        %487 = vset.pattern.permute.xlu0 1
        %488 = vperm.xlu0 %487, %v325
        %v489 = vpop.permute.xlu0 %488
        %v491 = vlaneseq
        %v492 = vshrl.u32 %v491, 7
        %v493 = vsub.s32 1, %v492
        %v494 = vrot.slane %v326, %v493
        %v495 = vmul.f32 %v429, %v494
        %v496 = vmul.f32 %v433, %v494
        %v497 = vmul.f32 %v437, %v494
        %v498 = vmul.f32 %v441, %v494
        %v499 = vmul.f32 %v445, %v494
        %v500 = vmul.f32 %v449, %v494
        %v501 = vmul.f32 %v453, %v494
        %v502 = vmul.f32 %v457, %v494
        %v503 = vmul.f32 %v461, %v494
        %v504 = vmul.f32 %v465, %v494
        %v505 = vmul.f32 %v469, %v494
        %v506 = vmul.f32 %v473, %v494
        %v507 = vmul.f32 %v477, %v494
        %v508 = vmul.f32 %v481, %v494
        %v509 = vmul.f32 %v485, %v494
        %v510 = vmul.f32 %v489, %v494
        %v511 = vadd.f32 %v411, %v495
        %v512 = vadd.f32 %v412, %v496
        %v513 = vadd.f32 %v413, %v497
        %v514 = vadd.f32 %v414, %v498
        %v515 = vadd.f32 %v415, %v499
        %v516 = vadd.f32 %v416, %v500
        %v517 = vadd.f32 %v417, %v501
        %v518 = vadd.f32 %v418, %v502
        %v519 = vadd.f32 %v419, %v503
        %v520 = vadd.f32 %v420, %v504
        %v521 = vadd.f32 %v421, %v505
        %v522 = vadd.f32 %v422, %v506
        %v523 = vadd.f32 %v423, %v507
        %v524 = vadd.f32 %v424, %v508
        %v525 = vadd.f32 %v425, %v509
        %v526 = vadd.f32 %v426, %v510
        %527 = vset.pattern.permute.xlu0 2
        %528 = vperm.xlu0 %527, %v310
        %v529 = vpop.permute.xlu0 %528
        %531 = vset.pattern.permute.xlu0 2
        %532 = vperm.xlu0 %531, %v311
        %v533 = vpop.permute.xlu0 %532
        %535 = vset.pattern.permute.xlu0 2
        %536 = vperm.xlu0 %535, %v312
        %v537 = vpop.permute.xlu0 %536
        %539 = vset.pattern.permute.xlu0 2
        %540 = vperm.xlu0 %539, %v313
        %v541 = vpop.permute.xlu0 %540
        %543 = vset.pattern.permute.xlu0 2
        %544 = vperm.xlu0 %543, %v314
        %v545 = vpop.permute.xlu0 %544
        %547 = vset.pattern.permute.xlu0 2
        %548 = vperm.xlu0 %547, %v315
        %v549 = vpop.permute.xlu0 %548
        %551 = vset.pattern.permute.xlu0 2
        %552 = vperm.xlu0 %551, %v316
        %v553 = vpop.permute.xlu0 %552
        %555 = vset.pattern.permute.xlu0 2
        %556 = vperm.xlu0 %555, %v317
        %v557 = vpop.permute.xlu0 %556
        %559 = vset.pattern.permute.xlu0 2
        %560 = vperm.xlu0 %559, %v318
        %v561 = vpop.permute.xlu0 %560
        %563 = vset.pattern.permute.xlu0 2
        %564 = vperm.xlu0 %563, %v319
        %v565 = vpop.permute.xlu0 %564
        %567 = vset.pattern.permute.xlu0 2
        %568 = vperm.xlu0 %567, %v320
        %v569 = vpop.permute.xlu0 %568
        %571 = vset.pattern.permute.xlu0 2
        %572 = vperm.xlu0 %571, %v321
        %v573 = vpop.permute.xlu0 %572
        %575 = vset.pattern.permute.xlu0 2
        %576 = vperm.xlu0 %575, %v322
        %v577 = vpop.permute.xlu0 %576
        %579 = vset.pattern.permute.xlu0 2
        %580 = vperm.xlu0 %579, %v323
        %v581 = vpop.permute.xlu0 %580
        %583 = vset.pattern.permute.xlu0 2
        %584 = vperm.xlu0 %583, %v324
        %v585 = vpop.permute.xlu0 %584
        %587 = vset.pattern.permute.xlu0 2
        %588 = vperm.xlu0 %587, %v325
        %v589 = vpop.permute.xlu0 %588
        %v591 = vlaneseq
        %v592 = vshrl.u32 %v591, 7
        %v593 = vsub.s32 2, %v592
        %v594 = vrot.slane %v326, %v593
        %v595 = vmul.f32 %v529, %v594
        %v596 = vmul.f32 %v533, %v594
        %v597 = vmul.f32 %v537, %v594
        %v598 = vmul.f32 %v541, %v594
        %v599 = vmul.f32 %v545, %v594
        %v600 = vmul.f32 %v549, %v594
        %v601 = vmul.f32 %v553, %v594
        %v602 = vmul.f32 %v557, %v594
        %v603 = vmul.f32 %v561, %v594
        %v604 = vmul.f32 %v565, %v594
        %v605 = vmul.f32 %v569, %v594
        %v606 = vmul.f32 %v573, %v594
        %v607 = vmul.f32 %v577, %v594
        %v608 = vmul.f32 %v581, %v594
        %v609 = vmul.f32 %v585, %v594
        %v610 = vmul.f32 %v589, %v594
        %v611 = vadd.f32 %v511, %v595
        %v612 = vadd.f32 %v512, %v596
        %v613 = vadd.f32 %v513, %v597
        %v614 = vadd.f32 %v514, %v598
        %v615 = vadd.f32 %v515, %v599
        %v616 = vadd.f32 %v516, %v600
        %v617 = vadd.f32 %v517, %v601
        %v618 = vadd.f32 %v518, %v602
        %v619 = vadd.f32 %v519, %v603
        %v620 = vadd.f32 %v520, %v604
        %v621 = vadd.f32 %v521, %v605
        %v622 = vadd.f32 %v522, %v606
        %v623 = vadd.f32 %v523, %v607
        %v624 = vadd.f32 %v524, %v608
        %v625 = vadd.f32 %v525, %v609
        %v626 = vadd.f32 %v526, %v610
        %v627 = vld [vmem:[%s4] sm:$0x1]
        %v629 = vlaneseq
        %v630 = vshrl.u32 %v629, 7
        %v631 = vsub.s32 0, %v630
        %v632 = vrot.slane %v627, %v631
        %v634 = vadd.f32 %v611, %v632
        %v635 = vadd.f32 %v612, %v632
        %v636 = vadd.f32 %v613, %v632
        %v637 = vadd.f32 %v614, %v632
        %v638 = vadd.f32 %v615, %v632
        %v639 = vadd.f32 %v616, %v632
        %v640 = vadd.f32 %v617, %v632
        %v641 = vadd.f32 %v618, %v632
        %v642 = vadd.f32 %v619, %v632
        %v643 = vadd.f32 %v620, %v632
        %v644 = vadd.f32 %v621, %v632
        %v645 = vadd.f32 %v622, %v632
        %v646 = vadd.f32 %v623, %v632
        %v647 = vadd.f32 %v624, %v632
        %v648 = vadd.f32 %v625, %v632
        %v649 = vadd.f32 %v626, %v632
        %v650 = vmax.f32 %v634, 0.0
        %v651 = vmax.f32 %v635, 0.0
        %v652 = vmax.f32 %v636, 0.0
        %v653 = vmax.f32 %v637, 0.0
        %v654 = vmax.f32 %v638, 0.0
        %v655 = vmax.f32 %v639, 0.0
        %v656 = vmax.f32 %v640, 0.0
        %v657 = vmax.f32 %v641, 0.0
        %v658 = vmax.f32 %v642, 0.0
        %v659 = vmax.f32 %v643, 0.0
        %v660 = vmax.f32 %v644, 0.0
        %v661 = vmax.f32 %v645, 0.0
        %v662 = vmax.f32 %v646, 0.0
        %v663 = vmax.f32 %v647, 0.0
        %v664 = vmax.f32 %v648, 0.0
        %v665 = vmax.f32 %v649, 0.0
        %v666 = vpack.c.bf16 %v651, %v650
        %v667 = vpack.c.bf16 %v653, %v652
        %v668 = vpack.c.bf16 %v655, %v654
        %v669 = vpack.c.bf16 %v657, %v656
        %v670 = vpack.c.bf16 %v659, %v658
        %v671 = vpack.c.bf16 %v661, %v660
        %v672 = vpack.c.bf16 %v663, %v662
        %v673 = vpack.c.bf16 %v665, %v664
        %v674 = vld [vmem:[%s2] sm:$0xf]
        %v675 = vld [vmem:[%s2 + $0x4] sm:$0xf]
        %v676 = vld [vmem:[%s2 + $0x8] sm:$0xf]
        %v677 = vld [vmem:[%s2 + $0xc] sm:$0xf]
        %v678 = vld [vmem:[%s2 + $0x10] sm:$0xf]
        %v679 = vld [vmem:[%s2 + $0x14] sm:$0xf]
        %v680 = vld [vmem:[%s2 + $0x18] sm:$0xf]
        %v681 = vld [vmem:[%s2 + $0x1c] sm:$0xf]
        %v682 = vld [vmem:[%s5] sm:$0x1]
        %v684 = vlaneseq
        %v685 = vshrl.u32 %v684, 7
        %v686 = vsub.s32 0, %v685
        %v687 = vrot.slane %v682, %v686
        %v697 = vunpack.c.l.b16 %v674
        %v698 = vunpack.c.l.b16 %v675
        %v699 = vunpack.c.l.b16 %v676
        %v700 = vunpack.c.l.b16 %v677
        %v701 = vunpack.c.l.b16 %v678
        %v702 = vunpack.c.l.b16 %v679
        %v703 = vunpack.c.l.b16 %v680
        %v704 = vunpack.c.l.b16 %v681
        %v705 = vpack.c.b16 %v698, %v697
        %v706 = vpack.c.b16 %v700, %v699
        %v707 = vpack.c.b16 %v702, %v701
        %v708 = vpack.c.b16 %v704, %v703
        %vm713 = vcmask 523264
        %v715 = vsel %vm713, %v666, 0
        %v718 = vsel %vm713, %v667, 0
        %v721 = vsel %vm713, %v668, 0
        %v724 = vsel %vm713, %v669, 0
        %v727 = vsel %vm713, %v670, 0
        %v730 = vsel %vm713, %v671, 0
        %v733 = vsel %vm713, %v672, 0
        %v736 = vsel %vm713, %v673, 0
        %738 = vmatprep.subr.bf16.mxu0 0
        %739 = vmatpush1.bf16.msra.mxu0 %v705
        %740 = vmatprep.subr.bf16.mxu0 0
        %741 = vmatpush1.bf16.msra.mxu0 %v706
        %742 = vmatprep.subr.bf16.mxu0 0
        %743 = vmatpush1.bf16.msra.mxu0 %v707
        %744 = vmatprep.subr.bf16.mxu0 0
        %745 = vmatpush1.bf16.msra.mxu0 %v708
        %746 = vmatprep.subr.bf16.mxu0 0
        %747 = vmatpush1.bf16.msra.mxu0 0
        %748 = vmatprep.subr.bf16.mxu0 0
        %749 = vmatpush1.bf16.msra.mxu0 0
        %750 = vmatprep.subr.bf16.mxu0 0
        %751 = vmatpush1.bf16.msra.mxu0 0
        %752 = vmatprep.subr.bf16.mxu0 0
        %753 = vmatpush1.bf16.msra.mxu0 0
        %754 = vmatprep.subr.bf16.mxu0 0
        %755 = vmatpush1.bf16.msra.mxu0 0
        %756 = vmatprep.subr.bf16.mxu0 0
        %757 = vmatpush1.bf16.msra.mxu0 0
        %758 = vmatprep.subr.bf16.mxu0 0
        %759 = vmatpush1.bf16.msra.mxu0 0
        %760 = vmatprep.subr.bf16.mxu0 0
        %761 = vmatpush1.bf16.msra.mxu0 0
        %762 = vmatprep.subr.bf16.mxu0 0
        %763 = vmatpush1.bf16.msra.mxu0 0
        %764 = vmatprep.subr.bf16.mxu0 0
        %765 = vmatpush1.bf16.msra.mxu0 0
        %766 = vmatprep.subr.bf16.mxu0 0
        %767 = vmatpush1.bf16.msra.mxu0 0
        %768 = vmatprep.subr.bf16.mxu0 0
        %769 = vmatpush1.bf16.msra.mxu0 0
        %770 = vmatprep.mubr.bf16.mxu0 0
        %771 = vmatmul.mubr.bf16.gmra.mrb[0].mxu0 %v715
        %v772 = vpop.f32.mrb[0].mxu0
        %v773 = vadd.f32 %v687, %v772
        %v774 = vpop.f32.mrb[0].mxu0
        %v775 = vpop.f32.mrb[0].mxu0
        %v776 = vadd.f32 %v687, %v775
        %v777 = vpop.f32.mrb[0].mxu0
        %778 = vmatprep.mubr.bf16.mxu0 0
        %779 = vmatmul.mubr.bf16.gmra.mrb[0].mxu0 %v718
        %v780 = vpop.f32.mrb[0].mxu0
        %v781 = vadd.f32 %v687, %v780
        %v782 = vpop.f32.mrb[0].mxu0
        %v783 = vpop.f32.mrb[0].mxu0
        %v784 = vadd.f32 %v687, %v783
        %v785 = vpop.f32.mrb[0].mxu0
        %786 = vmatprep.mubr.bf16.mxu0 0
        %787 = vmatmul.mubr.bf16.gmra.mrb[0].mxu0 %v721
        %v788 = vpop.f32.mrb[0].mxu0
        %v789 = vadd.f32 %v687, %v788
        %v790 = vpop.f32.mrb[0].mxu0
        %v791 = vpop.f32.mrb[0].mxu0
        %v792 = vadd.f32 %v687, %v791
        %v793 = vpop.f32.mrb[0].mxu0
        %794 = vmatprep.mubr.bf16.mxu0 0
        %795 = vmatmul.mubr.bf16.gmra.mrb[0].mxu0 %v724
        %v796 = vpop.f32.mrb[0].mxu0
        %v797 = vadd.f32 %v687, %v796
        %v798 = vpop.f32.mrb[0].mxu0
        %v799 = vpop.f32.mrb[0].mxu0
        %v800 = vadd.f32 %v687, %v799
        %v801 = vpop.f32.mrb[0].mxu0
        %802 = vmatprep.mubr.bf16.mxu0 0
        %803 = vmatmul.mubr.bf16.gmra.mrb[0].mxu0 %v727
        %v804 = vpop.f32.mrb[0].mxu0
        %v805 = vadd.f32 %v687, %v804
        %v806 = vpop.f32.mrb[0].mxu0
        %v807 = vpop.f32.mrb[0].mxu0
        %v808 = vadd.f32 %v687, %v807
        %v809 = vpop.f32.mrb[0].mxu0
        %810 = vmatprep.mubr.bf16.mxu0 0
        %811 = vmatmul.mubr.bf16.gmra.mrb[0].mxu0 %v730
        %v812 = vpop.f32.mrb[0].mxu0
        %v813 = vadd.f32 %v687, %v812
        %v814 = vpop.f32.mrb[0].mxu0
        %v815 = vpop.f32.mrb[0].mxu0
        %v816 = vadd.f32 %v687, %v815
        %v817 = vpop.f32.mrb[0].mxu0
        %818 = vmatprep.mubr.bf16.mxu0 0
        %819 = vmatmul.mubr.bf16.gmra.mrb[0].mxu0 %v733
        %v820 = vpop.f32.mrb[0].mxu0
        %v821 = vadd.f32 %v687, %v820
        %v822 = vpop.f32.mrb[0].mxu0
        %v823 = vpop.f32.mrb[0].mxu0
        %v824 = vadd.f32 %v687, %v823
        %v825 = vpop.f32.mrb[0].mxu0
        %826 = vmatprep.mubr.bf16.mxu0 0
        %827 = vmatmul.mubr.bf16.gmra.mrb[0].mxu0 %v736
        %v828 = vpop.f32.mrb[0].mxu0
        %v829 = vadd.f32 %v687, %v828
        %v830 = vpop.f32.mrb[0].mxu0
        %v831 = vpop.f32.mrb[0].mxu0
        %v832 = vadd.f32 %v687, %v831
        %v833 = vpop.f32.mrb[0].mxu0
        %834 = vdwg.mxu0
        %v835 = vmax.f32 %v773, 0.0
        %v836 = vmax.f32 %v776, 0.0
        %v837 = vmax.f32 %v781, 0.0
        %v838 = vmax.f32 %v784, 0.0
        %v839 = vmax.f32 %v789, 0.0
        %v840 = vmax.f32 %v792, 0.0
        %v841 = vmax.f32 %v797, 0.0
        %v842 = vmax.f32 %v800, 0.0
        %v843 = vmax.f32 %v805, 0.0
        %v844 = vmax.f32 %v808, 0.0
        %v845 = vmax.f32 %v813, 0.0
        %v846 = vmax.f32 %v816, 0.0
        %v847 = vmax.f32 %v821, 0.0
        %v848 = vmax.f32 %v824, 0.0
        %v849 = vmax.f32 %v829, 0.0
        %v850 = vmax.f32 %v832, 0.0
        %v851 = vpack.c.bf16 %v836, %v835
        %v852 = vpack.c.bf16 %v838, %v837
        %v853 = vpack.c.bf16 %v840, %v839
        %v854 = vpack.c.bf16 %v842, %v841
        %v855 = vpack.c.bf16 %v844, %v843
        %v856 = vpack.c.bf16 %v846, %v845
        %v857 = vpack.c.bf16 %v848, %v847
        %v858 = vpack.c.bf16 %v850, %v849
        %v859 = vld [vmem:[%s3] sm:$0xf]
        %v860 = vld [vmem:[%s3 + $0x4] sm:$0xf]
        %v861 = vld [vmem:[%s3 + $0x8] sm:$0xf]
        %v862 = vld [vmem:[%s3 + $0xc] sm:$0xf]
        %v863 = vld [vmem:[%s3 + $0x10] sm:$0xf]
        %v864 = vld [vmem:[%s3 + $0x14] sm:$0xf]
        %v865 = vld [vmem:[%s3 + $0x18] sm:$0xf]
        %v866 = vld [vmem:[%s3 + $0x1c] sm:$0xf]
        %v867 = vld [vmem:[%s6] sm:$0x1]
        %v869 = vlaneseq
        %v870 = vshrl.u32 %v869, 7
        %v871 = vsub.s32 0, %v870
        %v872 = vrot.slane %v867, %v871
        %v882 = vunpack.c.l.b16 %v859
        %v883 = vunpack.c.l.b16 %v860
        %v884 = vunpack.c.l.b16 %v861
        %v885 = vunpack.c.l.b16 %v862
        %v886 = vunpack.c.l.b16 %v863
        %v887 = vunpack.c.l.b16 %v864
        %v888 = vunpack.c.l.b16 %v865
        %v889 = vunpack.c.l.b16 %v866
        %v890 = vpack.c.b16 %v883, %v882
        %v891 = vpack.c.b16 %v885, %v884
        %v892 = vpack.c.b16 %v887, %v886
        %v893 = vpack.c.b16 %v889, %v888
        %v899 = vsel %vm713, %v851, 0
        %v902 = vsel %vm713, %v852, 0
        %v905 = vsel %vm713, %v853, 0
        %v908 = vsel %vm713, %v854, 0
        %v911 = vsel %vm713, %v855, 0
        %v914 = vsel %vm713, %v856, 0
        %v917 = vsel %vm713, %v857, 0
        %v920 = vsel %vm713, %v858, 0
        %922 = vmatprep.subr.bf16.mxu0 0
        %923 = vmatpush1.bf16.msra.mxu0 %v890
        %924 = vmatprep.subr.bf16.mxu0 0
        %925 = vmatpush1.bf16.msra.mxu0 %v891
        %926 = vmatprep.subr.bf16.mxu0 0
        %927 = vmatpush1.bf16.msra.mxu0 %v892
        %928 = vmatprep.subr.bf16.mxu0 0
        %929 = vmatpush1.bf16.msra.mxu0 %v893
        %930 = vmatprep.subr.bf16.mxu0 0
        %931 = vmatpush1.bf16.msra.mxu0 0
        %932 = vmatprep.subr.bf16.mxu0 0
        %933 = vmatpush1.bf16.msra.mxu0 0
        %934 = vmatprep.subr.bf16.mxu0 0
        %935 = vmatpush1.bf16.msra.mxu0 0
        %936 = vmatprep.subr.bf16.mxu0 0
        %937 = vmatpush1.bf16.msra.mxu0 0
        %938 = vmatprep.subr.bf16.mxu0 0
        %939 = vmatpush1.bf16.msra.mxu0 0
        %940 = vmatprep.subr.bf16.mxu0 0
        %941 = vmatpush1.bf16.msra.mxu0 0
        %942 = vmatprep.subr.bf16.mxu0 0
        %943 = vmatpush1.bf16.msra.mxu0 0
        %944 = vmatprep.subr.bf16.mxu0 0
        %945 = vmatpush1.bf16.msra.mxu0 0
        %946 = vmatprep.subr.bf16.mxu0 0
        %947 = vmatpush1.bf16.msra.mxu0 0
        %948 = vmatprep.subr.bf16.mxu0 0
        %949 = vmatpush1.bf16.msra.mxu0 0
        %950 = vmatprep.subr.bf16.mxu0 0
        %951 = vmatpush1.bf16.msra.mxu0 0
        %952 = vmatprep.subr.bf16.mxu0 0
        %953 = vmatpush1.bf16.msra.mxu0 0
        %954 = vmatprep.mubr.bf16.mxu0 0
        %955 = vmatmul.mubr.bf16.gmra.mrb[0].mxu0 %v899
        %v956 = vpop.f32.mrb[0].mxu0
        %v957 = vadd.f32 %v872, %v956
        %v958 = vpop.f32.mrb[0].mxu0
        %v959 = vpop.f32.mrb[0].mxu0
        %v960 = vadd.f32 %v872, %v959
        %v961 = vpop.f32.mrb[0].mxu0
        %962 = vmatprep.mubr.bf16.mxu0 0
        %963 = vmatmul.mubr.bf16.gmra.mrb[0].mxu0 %v902
        %v964 = vpop.f32.mrb[0].mxu0
        %v965 = vadd.f32 %v872, %v964
        %v966 = vpop.f32.mrb[0].mxu0
        %v967 = vpop.f32.mrb[0].mxu0
        %v968 = vadd.f32 %v872, %v967
        %v969 = vpop.f32.mrb[0].mxu0
        %970 = vmatprep.mubr.bf16.mxu0 0
        %971 = vmatmul.mubr.bf16.gmra.mrb[0].mxu0 %v905
        %v972 = vpop.f32.mrb[0].mxu0
        %v973 = vadd.f32 %v872, %v972
        %v974 = vpop.f32.mrb[0].mxu0
        %v975 = vpop.f32.mrb[0].mxu0
        %v976 = vadd.f32 %v872, %v975
        %v977 = vpop.f32.mrb[0].mxu0
        %978 = vmatprep.mubr.bf16.mxu0 0
        %979 = vmatmul.mubr.bf16.gmra.mrb[0].mxu0 %v908
        %v980 = vpop.f32.mrb[0].mxu0
        %v981 = vadd.f32 %v872, %v980
        %v982 = vpop.f32.mrb[0].mxu0
        %v983 = vpop.f32.mrb[0].mxu0
        %v984 = vadd.f32 %v872, %v983
        %v985 = vpop.f32.mrb[0].mxu0
        %986 = vmatprep.mubr.bf16.mxu0 0
        %987 = vmatmul.mubr.bf16.gmra.mrb[0].mxu0 %v911
        %v988 = vpop.f32.mrb[0].mxu0
        %v989 = vadd.f32 %v872, %v988
        %v990 = vpop.f32.mrb[0].mxu0
        %v991 = vpop.f32.mrb[0].mxu0
        %v992 = vadd.f32 %v872, %v991
        %v993 = vpop.f32.mrb[0].mxu0
        %994 = vmatprep.mubr.bf16.mxu0 0
        %995 = vmatmul.mubr.bf16.gmra.mrb[0].mxu0 %v914
        %v996 = vpop.f32.mrb[0].mxu0
        %v997 = vadd.f32 %v872, %v996
        %v998 = vpop.f32.mrb[0].mxu0
        %v999 = vpop.f32.mrb[0].mxu0
        %v1000 = vadd.f32 %v872, %v999
        %v1001 = vpop.f32.mrb[0].mxu0
        %1002 = vmatprep.mubr.bf16.mxu0 0
        %1003 = vmatmul.mubr.bf16.gmra.mrb[0].mxu0 %v917
        %v1004 = vpop.f32.mrb[0].mxu0
        %v1005 = vadd.f32 %v872, %v1004
        %v1006 = vpop.f32.mrb[0].mxu0
        %v1007 = vpop.f32.mrb[0].mxu0
        %v1008 = vadd.f32 %v872, %v1007
        %v1009 = vpop.f32.mrb[0].mxu0
        %1010 = vmatprep.mubr.bf16.mxu0 0
        %1011 = vmatmul.mubr.bf16.gmra.mrb[0].mxu0 %v920
        %v1012 = vpop.f32.mrb[0].mxu0
        %v1013 = vadd.f32 %v872, %v1012
        %v1014 = vpop.f32.mrb[0].mxu0
        %v1015 = vpop.f32.mrb[0].mxu0
        %v1016 = vadd.f32 %v872, %v1015
        %v1017 = vpop.f32.mrb[0].mxu0
        %1018 = vdwg.mxu0
        %v1019 = vmax.f32 %v957, 0.0
        %v1020 = vmax.f32 %v960, 0.0
        %v1021 = vmax.f32 %v965, 0.0
        %v1022 = vmax.f32 %v968, 0.0
        %v1023 = vmax.f32 %v973, 0.0
        %v1024 = vmax.f32 %v976, 0.0
        %v1025 = vmax.f32 %v981, 0.0
        %v1026 = vmax.f32 %v984, 0.0
        %v1027 = vmax.f32 %v989, 0.0
        %v1028 = vmax.f32 %v992, 0.0
        %v1029 = vmax.f32 %v997, 0.0
        %v1030 = vmax.f32 %v1000, 0.0
        %v1031 = vmax.f32 %v1005, 0.0
        %v1032 = vmax.f32 %v1008, 0.0
        %v1033 = vmax.f32 %v1013, 0.0
        %v1034 = vmax.f32 %v1016, 0.0
        %v1035 = vpack.c.bf16 %v1020, %v1019
        %v1036 = vpack.c.bf16 %v1022, %v1021
        %v1037 = vpack.c.bf16 %v1024, %v1023
        %v1038 = vpack.c.bf16 %v1026, %v1025
        %v1039 = vpack.c.bf16 %v1028, %v1027
        %v1040 = vpack.c.bf16 %v1030, %v1029
        %v1041 = vpack.c.bf16 %v1032, %v1031
        %v1042 = vpack.c.bf16 %v1034, %v1033
        %v1051 = vunpack.c.l.b16 %v1035
        %v1052 = vunpack.c.h.b16 %v1035
        %v1053 = vunpack.c.l.b16 %v1036
        %v1054 = vunpack.c.h.b16 %v1036
        %v1055 = vunpack.c.l.b16 %v1037
        %v1056 = vunpack.c.h.b16 %v1037
        %v1057 = vunpack.c.l.b16 %v1038
        %v1058 = vunpack.c.h.b16 %v1038
        %v1059 = vunpack.c.l.b16 %v1039
        %v1060 = vunpack.c.h.b16 %v1039
        %v1061 = vunpack.c.l.b16 %v1040
        %v1062 = vunpack.c.h.b16 %v1040
        %v1063 = vunpack.c.l.b16 %v1041
        %v1064 = vunpack.c.h.b16 %v1041
        %v1065 = vunpack.c.l.b16 %v1042
        %v1066 = vunpack.c.h.b16 %v1042
        %v1067 = vpack.c.b16 %v1051, %v1051
        %v1068 = vpack.c.b16 %v1052, %v1052
        %v1069 = vpack.c.b16 %v1053, %v1053
        %v1070 = vpack.c.b16 %v1054, %v1054
        %v1071 = vpack.c.b16 %v1055, %v1055
        %v1072 = vpack.c.b16 %v1056, %v1056
        %v1073 = vpack.c.b16 %v1057, %v1057
        %v1074 = vpack.c.b16 %v1058, %v1058
        %v1075 = vpack.c.b16 %v1059, %v1059
        %v1076 = vpack.c.b16 %v1060, %v1060
        %v1077 = vpack.c.b16 %v1061, %v1061
        %v1078 = vpack.c.b16 %v1062, %v1062
        %v1079 = vpack.c.b16 %v1063, %v1063
        %v1080 = vpack.c.b16 %v1064, %v1064
        %v1081 = vpack.c.b16 %v1065, %v1065
        %v1082 = vpack.c.b16 %v1066, %v1066
        %vm1083 = vcmask 1043456
        %v1086 = vsel %vm1083, %v1067, 4286644096
        %v1088 = vunpack.i.l.bf16 %v1086
        %v1089 = vunpack.i.h.bf16 %v1086
        %v1090 = vmax.f32 %v1088, %v1089
        %v1091 = vrot.slane %v1090, 4
        %v1092 = vmax.f32 %v1090, %v1091
        %v1093 = vrot.slane %v1092, 2
        %v1094 = vmax.f32 %v1092, %v1093
        %v1095 = vrot.slane %v1094, 1
        %v1096 = vmax.f32 %v1094, %v1095
        %v1097 = vpack.i.bf16 %v1096, %v1096
        %v1099 = vsel %vm1083, %v1068, 4286644096
        %v1101 = vunpack.i.l.bf16 %v1099
        %v1102 = vunpack.i.h.bf16 %v1099
        %v1103 = vmax.f32 %v1101, %v1102
        %v1104 = vrot.slane %v1103, 4
        %v1105 = vmax.f32 %v1103, %v1104
        %v1106 = vrot.slane %v1105, 2
        %v1107 = vmax.f32 %v1105, %v1106
        %v1108 = vrot.slane %v1107, 1
        %v1109 = vmax.f32 %v1107, %v1108
        %v1110 = vpack.i.bf16 %v1109, %v1109
        %v1112 = vsel %vm1083, %v1069, 4286644096
        %v1114 = vunpack.i.l.bf16 %v1112
        %v1115 = vunpack.i.h.bf16 %v1112
        %v1116 = vmax.f32 %v1114, %v1115
        %v1117 = vrot.slane %v1116, 4
        %v1118 = vmax.f32 %v1116, %v1117
        %v1119 = vrot.slane %v1118, 2
        %v1120 = vmax.f32 %v1118, %v1119
        %v1121 = vrot.slane %v1120, 1
        %v1122 = vmax.f32 %v1120, %v1121
        %v1123 = vpack.i.bf16 %v1122, %v1122
        %v1125 = vsel %vm1083, %v1070, 4286644096
        %v1127 = vunpack.i.l.bf16 %v1125
        %v1128 = vunpack.i.h.bf16 %v1125
        %v1129 = vmax.f32 %v1127, %v1128
        %v1130 = vrot.slane %v1129, 4
        %v1131 = vmax.f32 %v1129, %v1130
        %v1132 = vrot.slane %v1131, 2
        %v1133 = vmax.f32 %v1131, %v1132
        %v1134 = vrot.slane %v1133, 1
        %v1135 = vmax.f32 %v1133, %v1134
        %v1136 = vpack.i.bf16 %v1135, %v1135
        %v1138 = vsel %vm1083, %v1071, 4286644096
        %v1140 = vunpack.i.l.bf16 %v1138
        %v1141 = vunpack.i.h.bf16 %v1138
        %v1142 = vmax.f32 %v1140, %v1141
        %v1143 = vrot.slane %v1142, 4
        %v1144 = vmax.f32 %v1142, %v1143
        %v1145 = vrot.slane %v1144, 2
        %v1146 = vmax.f32 %v1144, %v1145
        %v1147 = vrot.slane %v1146, 1
        %v1148 = vmax.f32 %v1146, %v1147
        %v1149 = vpack.i.bf16 %v1148, %v1148
        %v1151 = vsel %vm1083, %v1072, 4286644096
        %v1153 = vunpack.i.l.bf16 %v1151
        %v1154 = vunpack.i.h.bf16 %v1151
        %v1155 = vmax.f32 %v1153, %v1154
        %v1156 = vrot.slane %v1155, 4
        %v1157 = vmax.f32 %v1155, %v1156
        %v1158 = vrot.slane %v1157, 2
        %v1159 = vmax.f32 %v1157, %v1158
        %v1160 = vrot.slane %v1159, 1
        %v1161 = vmax.f32 %v1159, %v1160
        %v1162 = vpack.i.bf16 %v1161, %v1161
        %v1164 = vsel %vm1083, %v1073, 4286644096
        %v1166 = vunpack.i.l.bf16 %v1164
        %v1167 = vunpack.i.h.bf16 %v1164
        %v1168 = vmax.f32 %v1166, %v1167
        %v1169 = vrot.slane %v1168, 4
        %v1170 = vmax.f32 %v1168, %v1169
        %v1171 = vrot.slane %v1170, 2
        %v1172 = vmax.f32 %v1170, %v1171
        %v1173 = vrot.slane %v1172, 1
        %v1174 = vmax.f32 %v1172, %v1173
        %v1175 = vpack.i.bf16 %v1174, %v1174
        %v1177 = vsel %vm1083, %v1074, 4286644096
        %v1179 = vunpack.i.l.bf16 %v1177
        %v1180 = vunpack.i.h.bf16 %v1177
        %v1181 = vmax.f32 %v1179, %v1180
        %v1182 = vrot.slane %v1181, 4
        %v1183 = vmax.f32 %v1181, %v1182
        %v1184 = vrot.slane %v1183, 2
        %v1185 = vmax.f32 %v1183, %v1184
        %v1186 = vrot.slane %v1185, 1
        %v1187 = vmax.f32 %v1185, %v1186
        %v1188 = vpack.i.bf16 %v1187, %v1187
        %v1190 = vsel %vm1083, %v1075, 4286644096
        %v1192 = vunpack.i.l.bf16 %v1190
        %v1193 = vunpack.i.h.bf16 %v1190
        %v1194 = vmax.f32 %v1192, %v1193
        %v1195 = vrot.slane %v1194, 4
        %v1196 = vmax.f32 %v1194, %v1195
        %v1197 = vrot.slane %v1196, 2
        %v1198 = vmax.f32 %v1196, %v1197
        %v1199 = vrot.slane %v1198, 1
        %v1200 = vmax.f32 %v1198, %v1199
        %v1201 = vpack.i.bf16 %v1200, %v1200
        %v1203 = vsel %vm1083, %v1076, 4286644096
        %v1205 = vunpack.i.l.bf16 %v1203
        %v1206 = vunpack.i.h.bf16 %v1203
        %v1207 = vmax.f32 %v1205, %v1206
        %v1208 = vrot.slane %v1207, 4
        %v1209 = vmax.f32 %v1207, %v1208
        %v1210 = vrot.slane %v1209, 2
        %v1211 = vmax.f32 %v1209, %v1210
        %v1212 = vrot.slane %v1211, 1
        %v1213 = vmax.f32 %v1211, %v1212
        %v1214 = vpack.i.bf16 %v1213, %v1213
        %v1216 = vsel %vm1083, %v1077, 4286644096
        %v1218 = vunpack.i.l.bf16 %v1216
        %v1219 = vunpack.i.h.bf16 %v1216
        %v1220 = vmax.f32 %v1218, %v1219
        %v1221 = vrot.slane %v1220, 4
        %v1222 = vmax.f32 %v1220, %v1221
        %v1223 = vrot.slane %v1222, 2
        %v1224 = vmax.f32 %v1222, %v1223
        %v1225 = vrot.slane %v1224, 1
        %v1226 = vmax.f32 %v1224, %v1225
        %v1227 = vpack.i.bf16 %v1226, %v1226
        %v1229 = vsel %vm1083, %v1078, 4286644096
        %v1231 = vunpack.i.l.bf16 %v1229
        %v1232 = vunpack.i.h.bf16 %v1229
        %v1233 = vmax.f32 %v1231, %v1232
        %v1234 = vrot.slane %v1233, 4
        %v1235 = vmax.f32 %v1233, %v1234
        %v1236 = vrot.slane %v1235, 2
        %v1237 = vmax.f32 %v1235, %v1236
        %v1238 = vrot.slane %v1237, 1
        %v1239 = vmax.f32 %v1237, %v1238
        %v1240 = vpack.i.bf16 %v1239, %v1239
        %v1242 = vsel %vm1083, %v1079, 4286644096
        %v1244 = vunpack.i.l.bf16 %v1242
        %v1245 = vunpack.i.h.bf16 %v1242
        %v1246 = vmax.f32 %v1244, %v1245
        %v1247 = vrot.slane %v1246, 4
        %v1248 = vmax.f32 %v1246, %v1247
        %v1249 = vrot.slane %v1248, 2
        %v1250 = vmax.f32 %v1248, %v1249
        %v1251 = vrot.slane %v1250, 1
        %v1252 = vmax.f32 %v1250, %v1251
        %v1253 = vpack.i.bf16 %v1252, %v1252
        %v1255 = vsel %vm1083, %v1080, 4286644096
        %v1257 = vunpack.i.l.bf16 %v1255
        %v1258 = vunpack.i.h.bf16 %v1255
        %v1259 = vmax.f32 %v1257, %v1258
        %v1260 = vrot.slane %v1259, 4
        %v1261 = vmax.f32 %v1259, %v1260
        %v1262 = vrot.slane %v1261, 2
        %v1263 = vmax.f32 %v1261, %v1262
        %v1264 = vrot.slane %v1263, 1
        %v1265 = vmax.f32 %v1263, %v1264
        %v1266 = vpack.i.bf16 %v1265, %v1265
        %v1268 = vsel %vm1083, %v1081, 4286644096
        %v1270 = vunpack.i.l.bf16 %v1268
        %v1271 = vunpack.i.h.bf16 %v1268
        %v1272 = vmax.f32 %v1270, %v1271
        %v1273 = vrot.slane %v1272, 4
        %v1274 = vmax.f32 %v1272, %v1273
        %v1275 = vrot.slane %v1274, 2
        %v1276 = vmax.f32 %v1274, %v1275
        %v1277 = vrot.slane %v1276, 1
        %v1278 = vmax.f32 %v1276, %v1277
        %v1279 = vpack.i.bf16 %v1278, %v1278
        %v1281 = vsel %vm1083, %v1082, 4286644096
        %v1283 = vunpack.i.l.bf16 %v1281
        %v1284 = vunpack.i.h.bf16 %v1281
        %v1285 = vmax.f32 %v1283, %v1284
        %v1286 = vrot.slane %v1285, 4
        %v1287 = vmax.f32 %v1285, %v1286
        %v1288 = vrot.slane %v1287, 2
        %v1289 = vmax.f32 %v1287, %v1288
        %v1290 = vrot.slane %v1289, 1
        %v1291 = vmax.f32 %v1289, %v1290
        %v1292 = vpack.i.bf16 %v1291, %v1291
        %v1309 = vunpack.c.l.b16 %v1097
        %v1310 = vunpack.c.l.b16 %v1110
        %v1311 = vunpack.c.l.b16 %v1123
        %v1312 = vunpack.c.l.b16 %v1136
        %v1313 = vunpack.c.l.b16 %v1149
        %v1314 = vunpack.c.l.b16 %v1162
        %v1315 = vunpack.c.l.b16 %v1175
        %v1316 = vunpack.c.l.b16 %v1188
        %v1317 = vunpack.c.l.b16 %v1201
        %v1318 = vunpack.c.l.b16 %v1214
        %v1319 = vunpack.c.l.b16 %v1227
        %v1320 = vunpack.c.l.b16 %v1240
        %v1321 = vunpack.c.l.b16 %v1253
        %v1322 = vunpack.c.l.b16 %v1266
        %v1323 = vunpack.c.l.b16 %v1279
        %v1324 = vunpack.c.l.b16 %v1292
        %v1325 = vpack.c.b16 %v1309, %v1309
        %v1326 = vpack.c.b16 %v1310, %v1310
        %v1327 = vpack.c.b16 %v1311, %v1311
        %v1328 = vpack.c.b16 %v1312, %v1312
        %v1329 = vpack.c.b16 %v1313, %v1313
        %v1330 = vpack.c.b16 %v1314, %v1314
        %v1331 = vpack.c.b16 %v1315, %v1315
        %v1332 = vpack.c.b16 %v1316, %v1316
        %v1333 = vpack.c.b16 %v1317, %v1317
        %v1334 = vpack.c.b16 %v1318, %v1318
        %v1335 = vpack.c.b16 %v1319, %v1319
        %v1336 = vpack.c.b16 %v1320, %v1320
        %v1337 = vpack.c.b16 %v1321, %v1321
        %v1338 = vpack.c.b16 %v1322, %v1322
        %v1339 = vpack.c.b16 %v1323, %v1323
        %v1340 = vpack.c.b16 %v1324, %v1324
        %v1341 = vunpack.c.l.b16 %v1325
        %v1342 = vunpack.c.l.b16 %v1326
        %v1343 = vunpack.c.l.b16 %v1327
        %v1344 = vunpack.c.l.b16 %v1328
        %v1345 = vunpack.c.l.b16 %v1329
        %v1346 = vunpack.c.l.b16 %v1330
        %v1347 = vunpack.c.l.b16 %v1331
        %v1348 = vunpack.c.l.b16 %v1332
        %v1349 = vunpack.c.l.b16 %v1333
        %v1350 = vunpack.c.l.b16 %v1334
        %v1351 = vunpack.c.l.b16 %v1335
        %v1352 = vunpack.c.l.b16 %v1336
        %v1353 = vunpack.c.l.b16 %v1337
        %v1354 = vunpack.c.l.b16 %v1338
        %v1355 = vunpack.c.l.b16 %v1339
        %v1356 = vunpack.c.l.b16 %v1340
        %vm1357 = vcmask 1041409
        %v1358 = vsel %vm1357, %v1342, %v1341
        %vm1359 = vcmask 1042434
        %v1360 = vsel %vm1359, %v1343, %v1358
        %vm1361 = vcmask 1043459
        %v1362 = vsel %vm1361, %v1344, %v1360
        %vm1363 = vcmask 1044484
        %v1364 = vsel %vm1363, %v1345, %v1362
        %vm1365 = vcmask 1045509
        %v1366 = vsel %vm1365, %v1346, %v1364
        %vm1367 = vcmask 1046534
        %v1368 = vsel %vm1367, %v1347, %v1366
        %vm1369 = vcmask 1047559
        %v1370 = vsel %vm1369, %v1348, %v1368
        %v1371 = vsel %vm1357, %v1350, %v1349
        %v1372 = vsel %vm1359, %v1351, %v1371
        %v1373 = vsel %vm1361, %v1352, %v1372
        %v1374 = vsel %vm1363, %v1353, %v1373
        %v1375 = vsel %vm1365, %v1354, %v1374
        %v1376 = vsel %vm1367, %v1355, %v1375
        %v1377 = vsel %vm1369, %v1356, %v1376
        %v1378 = vpack.c.b16 %v1370, %v1370
        %v1379 = vpack.c.b16 %v1377, %v1377
        %1382 = vst [vmem:[%s296] sm:$0xf] %v1378
        %1383 = vst [vmem:[%s296 + $0x4] sm:$0xf] %v1379
        %s1384 = sand.u32 %s197, 1
        %s1385 = scalar_lea.sflag [#allocation3], %s1384
        %s1386 = sand.u32 %s197, 1
        %s1387 = smul.addr %s1386, 8
        %s1388 = scalar_lea.vmem [#allocation2], %s1387
        // Predicated region
        $region49: #{tpu_custom_call.1} parent=47 // pred_check
          %p1389 = pneg %p207
        $region50: #{tpu_custom_call.1} parent=47 // pred_check_branch
          %1391 = sbr.rel (%p1389) target = $region52
        $region51: #{tpu_custom_call.1} parent=47 // pred_region
          %s1392 = smul.u32 2, %s26
          %s1394 = ssub.s32 128, 128
          %1395 = vsyncadd %s1385, %s1394
          %s1396 = smul.addr %s25, 2
          %s1397 = sadd.s32 %s1392, %s1396
          %s1398 = smul.addr %s1397, 64
          %s1399 = scalar_lea.hbm %s7, %s1398
          %s1400 = sshll.u32 %s1388, 4
          %s1401 = int_to_ptr.vmem [resolvable:$true] %s1400
          %1406 = dma.vmem_to_hbm [thread:$0]  %s1401, 128, %s1399, %s1385, 64, 64, 4
        $region52: #{tpu_custom_call.1} parent=47 // pred_fallthru
          _
      $region48: #{tpu_custom_call.1} parent=5 // pred_fallthru
        _
      %p1407 = scmp.le.s32.totalorder 2, %s16
      // Predicated region
      $region53: #{tpu_custom_call.1} parent=5 // pred_check
        %p1408 = pneg %p1407
      $region54: #{tpu_custom_call.1} parent=5 // pred_check_branch
        %1410 = sbr.rel (%p1408) target = $region56
      $region55: #{tpu_custom_call.1} parent=5 // pred_region
        %s1411 = ssub.s32 %s16, 2
        // Predicated region
        $region57: #{tpu_custom_call.1} parent=55 // pred_check
          %p1412 = pneg %p213
        $region58: #{tpu_custom_call.1} parent=55 // pred_check_branch
          %1414 = sbr.rel (%p1412) target = $region60
        $region59: #{tpu_custom_call.1} parent=55 // pred_region
          %s1415 = sand.u32 %s198, 1
          %s1416 = scalar_lea.sflag [#allocation3], %s1415
          %s1417 = sand.u32 %s198, 1
          %s1418 = smul.addr %s1417, 8
          %s1419 = scalar_lea.vmem [#allocation2], %s1418
          %1420 = dma.done %s1416, 128
        $region60: #{tpu_custom_call.1} parent=55 // pred_fallthru
          _
      $region56: #{tpu_custom_call.1} parent=5 // pred_fallthru
        _
    $region6: #{tpu_custom_call.1} parent=1 // loop_footer
      %s20 = sadd.s32 1, %s16
    $region7: #{tpu_custom_call.1} parent=1 // loop_footer_branch
      %15 = sbr.rel target = $region3
    $region8: #{tpu_custom_call.1} parent=1 // loop_exit
      _
    %1421 = vsyncpa [#allocation3], 1
    %s1422 = scalar_lea.sflag [#allocation3], 1
    %1423 = vsyncpa %s1422, 1

</llo_original>
